<compile_context>
chip_gen: v6e
topology: v6e:2x2x1
jax: 0.10.0
libtpu: 0.0.40
codegen_flags: <defaults>
</compile_context>

<pallas_src>
import jax
import jax.numpy as jnp
from jax.experimental import pallas as pl
from jax.experimental.pallas import tpu as pltpu


# ---------------------------------------------------------------------------
# Fused kernel: 1x1 channel mix (VPU FMAs) + x`scale` nearest upsample (one MXU
# matmul per output channel against a 0/1 column-selection matrix).
# ---------------------------------------------------------------------------
def kpe_fused_kernel(x_ref, w_ref, b_ref, ew_ref, o_ref):
    # x_ref : (1, Cin, TH, W)    VMEM
    # w_ref : (Cin, Cout)        SMEM   (scalar reads)
    # b_ref : (Cout,)            SMEM
    # ew_ref: (W, P)             VMEM   P = scale*scale*W, 0/1 selection matrix
    # o_ref : (1, Cout, TH, P)   VMEM   lane-dense output slab
    cin = x_ref.shape[1]
    cout = o_ref.shape[1]

    ew = ew_ref[...]                                   # (W, P)
    xs = [x_ref[0, ci] for ci in range(cin)]           # Cin x (TH, W) tiles

    for co in range(cout):
        # 1x1 conv for this output channel: Cin broadcast-FMAs on the VPU.
        f = xs[0] * w_ref[0, co] + b_ref[co]
        for ci in range(1, cin):
            f = f + xs[ci] * w_ref[ci, co]
        # x4 x4 nearest-neighbour upsample == single (TH, W) @ (W, P) matmul.
        y = jnp.dot(f, ew, preferred_element_type=jnp.float32)
        o_ref[0, co] = y.astype(o_ref.dtype)


def _pick_th(H, Cout, P, bytes_budget=2 * 1024 * 1024):
    """Largest H-tile whose output block stays under `bytes_budget` (f32)."""
    th = H
    while th > 8 and th % 2 == 0 and Cout * th * P * 4 > bytes_budget:
        th //= 2
    # BlockSpec legality: second-to-last block dim must be full H or divisible by 8.
    if th != H and th % 8 != 0:
        th = H
    return th


# ---------------------------------------------------------------------------
# KPE forward wrapper
# ---------------------------------------------------------------------------
def kpe_forward(x_nchw, w1, b1, upsample=4):
    """x: (N, Cin, H, W) f32; w1: (Cin, Cout); b1: (Cout,).

    Returns (N, Cout, upsample*H, upsample*W) == nearest-x`upsample` of the
    stand-in 1x1-conv feature map.
    """
    N, Cin, H, W = x_nchw.shape
    Cout = w1.shape[1]
    scale = upsample
    Ws = scale * W
    P = scale * Ws  # = scale^2 * W : folded output lane width

    # 0/1 selection matrix: ew[w, p] = 1  iff  w == (p % Ws) // scale.
    # (Exact in f32; tiny: W x scale^2*W, DMA'd once since its block index is const.)
    p_idx = jnp.arange(P)
    src = (p_idx % Ws) // scale
    ew = (jnp.arange(W)[:, None] == src[None, :]).astype(x_nchw.dtype)

    TH = _pick_th(H, Cout, P)
    grid = (N, H // TH)

    out4 = pl.pallas_call(
        kpe_fused_kernel,
        out_shape=jax.ShapeDtypeStruct((N, Cout, H, P), x_nchw.dtype),
        grid=grid,
        in_specs=[
            pl.BlockSpec((1, Cin, TH, W), lambda n, t: (n, 0, t, 0)),
            pl.BlockSpec(memory_space=pltpu.MemorySpace.SMEM),   # w1
            pl.BlockSpec(memory_space=pltpu.MemorySpace.SMEM),   # b1
            pl.BlockSpec((W, P), lambda n, t: (0, 0)),           # ew (constant block)
        ],
        out_specs=pl.BlockSpec((1, Cout, TH, P), lambda n, t: (n, 0, t, 0)),
        compiler_params=pltpu.CompilerParams(
            dimension_semantics=("parallel", "parallel")),
    )(x_nchw, w1, b1, ew)

    # (N, C, H, scale^2*W) -> (N, C, scale*H, scale*W): contiguous, free reshape.
    return out4.reshape(N, Cout, H * scale, W * scale)


if __name__ == "__main__":
    key = jax.random.PRNGKey(0)
    k_x, k_w, k_b = jax.random.split(key, 3)

    N, Cin, H, W = 2, 4, 16, 16
    Cout = 8
    upsample = 4

    x = jax.random.normal(k_x, (N, Cin, H, W), dtype=jnp.float32)
    w1 = jax.random.normal(k_w, (Cin, Cout), dtype=jnp.float32) * 0.1
    b1 = jax.random.normal(k_b, (Cout,), dtype=jnp.float32) * 0.01

    out = kpe_forward(x, w1, b1, upsample=upsample)
    out = jax.block_until_ready(out)

    # sanity: shape and exact nearest-neighbour semantics vs plain-JAX reference
    assert out.shape == (N, Cout, H * upsample, W * upsample), out.shape
    f1_ref = jnp.einsum("nchw,co->nohw", x, w1) + b1[None, :, None, None]
    ref = jnp.repeat(jnp.repeat(f1_ref, upsample, axis=2), upsample, axis=3)
    assert jnp.allclose(out, ref, atol=1e-5, rtol=1e-5)

    print("KERNEL_OK")
</pallas_src>

<mosaic_0001>
module attributes {stable_mosaic.version = 11 : i64} {
  func.func @kpe_fused_kernel(%arg0: i32, %arg1: i32, %arg2: memref<1x4x16x16xf32, #tpu.memory_space<vmem>>, %arg3: memref<4x8xf32, #tpu.memory_space<smem>>, %arg4: memref<8xf32, #tpu.memory_space<smem>>, %arg5: memref<16x256xf32, #tpu.memory_space<vmem>>, %arg6: memref<1x8x16x256xf32, #tpu.memory_space<vmem>>) attributes {dimension_semantics = [#tpu.dimension_semantics<parallel>, #tpu.dimension_semantics<parallel>], iteration_bounds = array<i64: 2, 1>, scalar_prefetch = 0 : i64, scratch_operands = 0 : i64, tpu.core_type = #tpu.core_type<tc>, window_params = [{transform_indices = @transform_0, window_bounds = array<i64: 1, 4, 16, 16>}, {transform_indices = @transform_1, window_bounds = array<i64: 4, 8>}, {transform_indices = @transform_2, window_bounds = array<i64: 8>}, {pipeline_mode = #tpu.pipeline_mode<synchronous>, transform_indices = @transform_3, window_bounds = array<i64: 16, 256>}, {transform_indices = @transform_4, window_bounds = array<i64: 1, 8, 16, 256>}]} {
    %c0 = arith.constant 0 : index
    %c0_0 = arith.constant 0 : index
    %0 = vector.load %arg5[%c0, %c0_0] : memref<16x256xf32, #tpu.memory_space<vmem>>, vector<16x256xf32>
    %c0_1 = arith.constant 0 : index
    %c0_2 = arith.constant 0 : index
    %c0_3 = arith.constant 0 : index
    %c0_4 = arith.constant 0 : index
    %1 = vector.load %arg2[%c0_1, %c0_2, %c0_3, %c0_4] : memref<1x4x16x16xf32, #tpu.memory_space<vmem>>, vector<1x1x16x16xf32>
    %2 = vector.shape_cast %1 : vector<1x1x16x16xf32> to vector<16x16xf32>
    %c0_5 = arith.constant 0 : index
    %c1 = arith.constant 1 : index
    %c0_6 = arith.constant 0 : index
    %c0_7 = arith.constant 0 : index
    %3 = vector.load %arg2[%c0_5, %c1, %c0_6, %c0_7] : memref<1x4x16x16xf32, #tpu.memory_space<vmem>>, vector<1x1x16x16xf32>
    %4 = vector.shape_cast %3 : vector<1x1x16x16xf32> to vector<16x16xf32>
    %c0_8 = arith.constant 0 : index
    %c2 = arith.constant 2 : index
    %c0_9 = arith.constant 0 : index
    %c0_10 = arith.constant 0 : index
    %5 = vector.load %arg2[%c0_8, %c2, %c0_9, %c0_10] : memref<1x4x16x16xf32, #tpu.memory_space<vmem>>, vector<1x1x16x16xf32>
    %6 = vector.shape_cast %5 : vector<1x1x16x16xf32> to vector<16x16xf32>
    %c0_11 = arith.constant 0 : index
    %c3 = arith.constant 3 : index
    %c0_12 = arith.constant 0 : index
    %c0_13 = arith.constant 0 : index
    %7 = vector.load %arg2[%c0_11, %c3, %c0_12, %c0_13] : memref<1x4x16x16xf32, #tpu.memory_space<vmem>>, vector<1x1x16x16xf32>
    %8 = vector.shape_cast %7 : vector<1x1x16x16xf32> to vector<16x16xf32>
    %c0_14 = arith.constant 0 : index
    %c0_15 = arith.constant 0 : index
    %9 = memref.load %arg3[%c0_14, %c0_15] : memref<4x8xf32, #tpu.memory_space<smem>>
    %10 = vector.broadcast %9 : f32 to vector<16x16xf32>
    %11 = arith.mulf %2, %10 : vector<16x16xf32>
    %c0_16 = arith.constant 0 : index
    %12 = memref.load %arg4[%c0_16] : memref<8xf32, #tpu.memory_space<smem>>
    %13 = vector.broadcast %12 : f32 to vector<16x16xf32>
    %14 = arith.addf %11, %13 : vector<16x16xf32>
    %c1_17 = arith.constant 1 : index
    %c0_18 = arith.constant 0 : index
    %15 = memref.load %arg3[%c1_17, %c0_18] : memref<4x8xf32, #tpu.memory_space<smem>>
    %16 = vector.broadcast %15 : f32 to vector<16x16xf32>
    %17 = arith.mulf %4, %16 : vector<16x16xf32>
    %18 = arith.addf %14, %17 : vector<16x16xf32>
    %c2_19 = arith.constant 2 : index
    %c0_20 = arith.constant 0 : index
    %19 = memref.load %arg3[%c2_19, %c0_20] : memref<4x8xf32, #tpu.memory_space<smem>>
    %20 = vector.broadcast %19 : f32 to vector<16x16xf32>
    %21 = arith.mulf %6, %20 : vector<16x16xf32>
    %22 = arith.addf %18, %21 : vector<16x16xf32>
    %c3_21 = arith.constant 3 : index
    %c0_22 = arith.constant 0 : index
    %23 = memref.load %arg3[%c3_21, %c0_22] : memref<4x8xf32, #tpu.memory_space<smem>>
    %24 = vector.broadcast %23 : f32 to vector<16x16xf32>
    %25 = arith.mulf %8, %24 : vector<16x16xf32>
    %26 = arith.addf %22, %25 : vector<16x16xf32>
    %cst = arith.constant dense<0.000000e+00> : vector<16x256xf32>
    %27 = tpu.matmul %26, %0, %cst {dimension_numbers = #tpu.dot_dimension_numbers<[1], [0], [0], [1], [0, 0, 1, 1], [], []>} : vector<16x16xf32>, vector<16x256xf32>, vector<16x256xf32> -> vector<16x256xf32>
    %c0_23 = arith.constant 0 : index
    %c0_24 = arith.constant 0 : index
    %c0_25 = arith.constant 0 : index
    %c0_26 = arith.constant 0 : index
    %28 = vector.load %arg6[%c0_23, %c0_24, %c0_25, %c0_26] : memref<1x8x16x256xf32, #tpu.memory_space<vmem>>, vector<1x1x16x256xf32>
    %29 = vector.shape_cast %28 : vector<1x1x16x256xf32> to vector<16x256xf32>
    %30 = vector.shape_cast %27 : vector<16x256xf32> to vector<1x1x16x256xf32>
    tpu.vector_store %arg6[%c0_23, %c0_24, %c0_25, %c0_26], %30 {strides = array<i32>} : memref<1x8x16x256xf32, #tpu.memory_space<vmem>>, vector<1x1x16x256xf32>,
    %c0_27 = arith.constant 0 : index
    %c1_28 = arith.constant 1 : index
    %31 = memref.load %arg3[%c0_27, %c1_28] : memref<4x8xf32, #tpu.memory_space<smem>>
    %32 = vector.broadcast %31 : f32 to vector<16x16xf32>
    %33 = arith.mulf %2, %32 : vector<16x16xf32>
    %c1_29 = arith.constant 1 : index
    %34 = memref.load %arg4[%c1_29] : memref<8xf32, #tpu.memory_space<smem>>
    %35 = vector.broadcast %34 : f32 to vector<16x16xf32>
    %36 = arith.addf %33, %35 : vector<16x16xf32>
    %c1_30 = arith.constant 1 : index
    %c1_31 = arith.constant 1 : index
    %37 = memref.load %arg3[%c1_30, %c1_31] : memref<4x8xf32, #tpu.memory_space<smem>>
    %38 = vector.broadcast %37 : f32 to vector<16x16xf32>
    %39 = arith.mulf %4, %38 : vector<16x16xf32>
    %40 = arith.addf %36, %39 : vector<16x16xf32>
    %c2_32 = arith.constant 2 : index
    %c1_33 = arith.constant 1 : index
    %41 = memref.load %arg3[%c2_32, %c1_33] : memref<4x8xf32, #tpu.memory_space<smem>>
    %42 = vector.broadcast %41 : f32 to vector<16x16xf32>
    %43 = arith.mulf %6, %42 : vector<16x16xf32>
    %44 = arith.addf %40, %43 : vector<16x16xf32>
    %c3_34 = arith.constant 3 : index
    %c1_35 = arith.constant 1 : index
    %45 = memref.load %arg3[%c3_34, %c1_35] : memref<4x8xf32, #tpu.memory_space<smem>>
    %46 = vector.broadcast %45 : f32 to vector<16x16xf32>
    %47 = arith.mulf %8, %46 : vector<16x16xf32>
    %48 = arith.addf %44, %47 : vector<16x16xf32>
    %cst_36 = arith.constant dense<0.000000e+00> : vector<16x256xf32>
    %49 = tpu.matmul %48, %0, %cst_36 {dimension_numbers = #tpu.dot_dimension_numbers<[1], [0], [0], [1], [0, 0, 1, 1], [], []>} : vector<16x16xf32>, vector<16x256xf32>, vector<16x256xf32> -> vector<16x256xf32>
    %c0_37 = arith.constant 0 : index
    %c1_38 = arith.constant 1 : index
    %c0_39 = arith.constant 0 : index
    %c0_40 = arith.constant 0 : index
    %50 = vector.load %arg6[%c0_37, %c1_38, %c0_39, %c0_40] : memref<1x8x16x256xf32, #tpu.memory_space<vmem>>, vector<1x1x16x256xf32>
    %51 = vector.shape_cast %50 : vector<1x1x16x256xf32> to vector<16x256xf32>
    %52 = vector.shape_cast %49 : vector<16x256xf32> to vector<1x1x16x256xf32>
    tpu.vector_store %arg6[%c0_37, %c1_38, %c0_39, %c0_40], %52 {strides = array<i32>} : memref<1x8x16x256xf32, #tpu.memory_space<vmem>>, vector<1x1x16x256xf32>,
    %c0_41 = arith.constant 0 : index
    %c2_42 = arith.constant 2 : index
    %53 = memref.load %arg3[%c0_41, %c2_42] : memref<4x8xf32, #tpu.memory_space<smem>>
    %54 = vector.broadcast %53 : f32 to vector<16x16xf32>
    %55 = arith.mulf %2, %54 : vector<16x16xf32>
    %c2_43 = arith.constant 2 : index
    %56 = memref.load %arg4[%c2_43] : memref<8xf32, #tpu.memory_space<smem>>
    %57 = vector.broadcast %56 : f32 to vector<16x16xf32>
    %58 = arith.addf %55, %57 : vector<16x16xf32>
    %c1_44 = arith.constant 1 : index
    %c2_45 = arith.constant 2 : index
    %59 = memref.load %arg3[%c1_44, %c2_45] : memref<4x8xf32, #tpu.memory_space<smem>>
    %60 = vector.broadcast %59 : f32 to vector<16x16xf32>
    %61 = arith.mulf %4, %60 : vector<16x16xf32>
    %62 = arith.addf %58, %61 : vector<16x16xf32>
    %c2_46 = arith.constant 2 : index
    %c2_47 = arith.constant 2 : index
    %63 = memref.load %arg3[%c2_46, %c2_47] : memref<4x8xf32, #tpu.memory_space<smem>>
    %64 = vector.broadcast %63 : f32 to vector<16x16xf32>
    %65 = arith.mulf %6, %64 : vector<16x16xf32>
    %66 = arith.addf %62, %65 : vector<16x16xf32>
    %c3_48 = arith.constant 3 : index
    %c2_49 = arith.constant 2 : index
    %67 = memref.load %arg3[%c3_48, %c2_49] : memref<4x8xf32, #tpu.memory_space<smem>>
    %68 = vector.broadcast %67 : f32 to vector<16x16xf32>
    %69 = arith.mulf %8, %68 : vector<16x16xf32>
    %70 = arith.addf %66, %69 : vector<16x16xf32>
    %cst_50 = arith.constant dense<0.000000e+00> : vector<16x256xf32>
    %71 = tpu.matmul %70, %0, %cst_50 {dimension_numbers = #tpu.dot_dimension_numbers<[1], [0], [0], [1], [0, 0, 1, 1], [], []>} : vector<16x16xf32>, vector<16x256xf32>, vector<16x256xf32> -> vector<16x256xf32>
    %c0_51 = arith.constant 0 : index
    %c2_52 = arith.constant 2 : index
    %c0_53 = arith.constant 0 : index
    %c0_54 = arith.constant 0 : index
    %72 = vector.load %arg6[%c0_51, %c2_52, %c0_53, %c0_54] : memref<1x8x16x256xf32, #tpu.memory_space<vmem>>, vector<1x1x16x256xf32>
    %73 = vector.shape_cast %72 : vector<1x1x16x256xf32> to vector<16x256xf32>
    %74 = vector.shape_cast %71 : vector<16x256xf32> to vector<1x1x16x256xf32>
    tpu.vector_store %arg6[%c0_51, %c2_52, %c0_53, %c0_54], %74 {strides = array<i32>} : memref<1x8x16x256xf32, #tpu.memory_space<vmem>>, vector<1x1x16x256xf32>,
    %c0_55 = arith.constant 0 : index
    %c3_56 = arith.constant 3 : index
    %75 = memref.load %arg3[%c0_55, %c3_56] : memref<4x8xf32, #tpu.memory_space<smem>>
    %76 = vector.broadcast %75 : f32 to vector<16x16xf32>
    %77 = arith.mulf %2, %76 : vector<16x16xf32>
    %c3_57 = arith.constant 3 : index
    %78 = memref.load %arg4[%c3_57] : memref<8xf32, #tpu.memory_space<smem>>
    %79 = vector.broadcast %78 : f32 to vector<16x16xf32>
    %80 = arith.addf %77, %79 : vector<16x16xf32>
    %c1_58 = arith.constant 1 : index
    %c3_59 = arith.constant 3 : index
    %81 = memref.load %arg3[%c1_58, %c3_59] : memref<4x8xf32, #tpu.memory_space<smem>>
    %82 = vector.broadcast %81 : f32 to vector<16x16xf32>
    %83 = arith.mulf %4, %82 : vector<16x16xf32>
    %84 = arith.addf %80, %83 : vector<16x16xf32>
    %c2_60 = arith.constant 2 : index
    %c3_61 = arith.constant 3 : index
    %85 = memref.load %arg3[%c2_60, %c3_61] : memref<4x8xf32, #tpu.memory_space<smem>>
    %86 = vector.broadcast %85 : f32 to vector<16x16xf32>
    %87 = arith.mulf %6, %86 : vector<16x16xf32>
    %88 = arith.addf %84, %87 : vector<16x16xf32>
    %c3_62 = arith.constant 3 : index
    %c3_63 = arith.constant 3 : index
    %89 = memref.load %arg3[%c3_62, %c3_63] : memref<4x8xf32, #tpu.memory_space<smem>>
    %90 = vector.broadcast %89 : f32 to vector<16x16xf32>
    %91 = arith.mulf %8, %90 : vector<16x16xf32>
    %92 = arith.addf %88, %91 : vector<16x16xf32>
    %cst_64 = arith.constant dense<0.000000e+00> : vector<16x256xf32>
    %93 = tpu.matmul %92, %0, %cst_64 {dimension_numbers = #tpu.dot_dimension_numbers<[1], [0], [0], [1], [0, 0, 1, 1], [], []>} : vector<16x16xf32>, vector<16x256xf32>, vector<16x256xf32> -> vector<16x256xf32>
    %c0_65 = arith.constant 0 : index
    %c3_66 = arith.constant 3 : index
    %c0_67 = arith.constant 0 : index
    %c0_68 = arith.constant 0 : index
    %94 = vector.load %arg6[%c0_65, %c3_66, %c0_67, %c0_68] : memref<1x8x16x256xf32, #tpu.memory_space<vmem>>, vector<1x1x16x256xf32>
    %95 = vector.shape_cast %94 : vector<1x1x16x256xf32> to vector<16x256xf32>
    %96 = vector.shape_cast %93 : vector<16x256xf32> to vector<1x1x16x256xf32>
    tpu.vector_store %arg6[%c0_65, %c3_66, %c0_67, %c0_68], %96 {strides = array<i32>} : memref<1x8x16x256xf32, #tpu.memory_space<vmem>>, vector<1x1x16x256xf32>,
    %c0_69 = arith.constant 0 : index
    %c4 = arith.constant 4 : index
    %97 = memref.load %arg3[%c0_69, %c4] : memref<4x8xf32, #tpu.memory_space<smem>>
    %98 = vector.broadcast %97 : f32 to vector<16x16xf32>
    %99 = arith.mulf %2, %98 : vector<16x16xf32>
    %c4_70 = arith.constant 4 : index
    %100 = memref.load %arg4[%c4_70] : memref<8xf32, #tpu.memory_space<smem>>
    %101 = vector.broadcast %100 : f32 to vector<16x16xf32>
    %102 = arith.addf %99, %101 : vector<16x16xf32>
    %c1_71 = arith.constant 1 : index
    %c4_72 = arith.constant 4 : index
    %103 = memref.load %arg3[%c1_71, %c4_72] : memref<4x8xf32, #tpu.memory_space<smem>>
    %104 = vector.broadcast %103 : f32 to vector<16x16xf32>
    %105 = arith.mulf %4, %104 : vector<16x16xf32>
    %106 = arith.addf %102, %105 : vector<16x16xf32>
    %c2_73 = arith.constant 2 : index
    %c4_74 = arith.constant 4 : index
    %107 = memref.load %arg3[%c2_73, %c4_74] : memref<4x8xf32, #tpu.memory_space<smem>>
    %108 = vector.broadcast %107 : f32 to vector<16x16xf32>
    %109 = arith.mulf %6, %108 : vector<16x16xf32>
    %110 = arith.addf %106, %109 : vector<16x16xf32>
    %c3_75 = arith.constant 3 : index
    %c4_76 = arith.constant 4 : index
    %111 = memref.load %arg3[%c3_75, %c4_76] : memref<4x8xf32, #tpu.memory_space<smem>>
    %112 = vector.broadcast %111 : f32 to vector<16x16xf32>
    %113 = arith.mulf %8, %112 : vector<16x16xf32>
    %114 = arith.addf %110, %113 : vector<16x16xf32>
    %cst_77 = arith.constant dense<0.000000e+00> : vector<16x256xf32>
    %115 = tpu.matmul %114, %0, %cst_77 {dimension_numbers = #tpu.dot_dimension_numbers<[1], [0], [0], [1], [0, 0, 1, 1], [], []>} : vector<16x16xf32>, vector<16x256xf32>, vector<16x256xf32> -> vector<16x256xf32>
    %c0_78 = arith.constant 0 : index
    %c4_79 = arith.constant 4 : index
    %c0_80 = arith.constant 0 : index
    %c0_81 = arith.constant 0 : index
    %116 = vector.load %arg6[%c0_78, %c4_79, %c0_80, %c0_81] : memref<1x8x16x256xf32, #tpu.memory_space<vmem>>, vector<1x1x16x256xf32>
    %117 = vector.shape_cast %116 : vector<1x1x16x256xf32> to vector<16x256xf32>
    %118 = vector.shape_cast %115 : vector<16x256xf32> to vector<1x1x16x256xf32>
    tpu.vector_store %arg6[%c0_78, %c4_79, %c0_80, %c0_81], %118 {strides = array<i32>} : memref<1x8x16x256xf32, #tpu.memory_space<vmem>>, vector<1x1x16x256xf32>,
    %c0_82 = arith.constant 0 : index
    %c5 = arith.constant 5 : index
    %119 = memref.load %arg3[%c0_82, %c5] : memref<4x8xf32, #tpu.memory_space<smem>>
    %120 = vector.broadcast %119 : f32 to vector<16x16xf32>
    %121 = arith.mulf %2, %120 : vector<16x16xf32>
    %c5_83 = arith.constant 5 : index
    %122 = memref.load %arg4[%c5_83] : memref<8xf32, #tpu.memory_space<smem>>
    %123 = vector.broadcast %122 : f32 to vector<16x16xf32>
    %124 = arith.addf %121, %123 : vector<16x16xf32>
    %c1_84 = arith.constant 1 : index
    %c5_85 = arith.constant 5 : index
    %125 = memref.load %arg3[%c1_84, %c5_85] : memref<4x8xf32, #tpu.memory_space<smem>>
    %126 = vector.broadcast %125 : f32 to vector<16x16xf32>
    %127 = arith.mulf %4, %126 : vector<16x16xf32>
    %128 = arith.addf %124, %127 : vector<16x16xf32>
    %c2_86 = arith.constant 2 : index
    %c5_87 = arith.constant 5 : index
    %129 = memref.load %arg3[%c2_86, %c5_87] : memref<4x8xf32, #tpu.memory_space<smem>>
    %130 = vector.broadcast %129 : f32 to vector<16x16xf32>
    %131 = arith.mulf %6, %130 : vector<16x16xf32>
    %132 = arith.addf %128, %131 : vector<16x16xf32>
    %c3_88 = arith.constant 3 : index
    %c5_89 = arith.constant 5 : index
    %133 = memref.load %arg3[%c3_88, %c5_89] : memref<4x8xf32, #tpu.memory_space<smem>>
    %134 = vector.broadcast %133 : f32 to vector<16x16xf32>
    %135 = arith.mulf %8, %134 : vector<16x16xf32>
    %136 = arith.addf %132, %135 : vector<16x16xf32>
    %cst_90 = arith.constant dense<0.000000e+00> : vector<16x256xf32>
    %137 = tpu.matmul %136, %0, %cst_90 {dimension_numbers = #tpu.dot_dimension_numbers<[1], [0], [0], [1], [0, 0, 1, 1], [], []>} : vector<16x16xf32>, vector<16x256xf32>, vector<16x256xf32> -> vector<16x256xf32>
    %c0_91 = arith.constant 0 : index
    %c5_92 = arith.constant 5 : index
    %c0_93 = arith.constant 0 : index
    %c0_94 = arith.constant 0 : index
    %138 = vector.load %arg6[%c0_91, %c5_92, %c0_93, %c0_94] : memref<1x8x16x256xf32, #tpu.memory_space<vmem>>, vector<1x1x16x256xf32>
    %139 = vector.shape_cast %138 : vector<1x1x16x256xf32> to vector<16x256xf32>
    %140 = vector.shape_cast %137 : vector<16x256xf32> to vector<1x1x16x256xf32>
    tpu.vector_store %arg6[%c0_91, %c5_92, %c0_93, %c0_94], %140 {strides = array<i32>} : memref<1x8x16x256xf32, #tpu.memory_space<vmem>>, vector<1x1x16x256xf32>,
    %c0_95 = arith.constant 0 : index
    %c6 = arith.constant 6 : index
    %141 = memref.load %arg3[%c0_95, %c6] : memref<4x8xf32, #tpu.memory_space<smem>>
    %142 = vector.broadcast %141 : f32 to vector<16x16xf32>
    %143 = arith.mulf %2, %142 : vector<16x16xf32>
    %c6_96 = arith.constant 6 : index
    %144 = memref.load %arg4[%c6_96] : memref<8xf32, #tpu.memory_space<smem>>
    %145 = vector.broadcast %144 : f32 to vector<16x16xf32>
    %146 = arith.addf %143, %145 : vector<16x16xf32>
    %c1_97 = arith.constant 1 : index
    %c6_98 = arith.constant 6 : index
    %147 = memref.load %arg3[%c1_97, %c6_98] : memref<4x8xf32, #tpu.memory_space<smem>>
    %148 = vector.broadcast %147 : f32 to vector<16x16xf32>
    %149 = arith.mulf %4, %148 : vector<16x16xf32>
    %150 = arith.addf %146, %149 : vector<16x16xf32>
    %c2_99 = arith.constant 2 : index
    %c6_100 = arith.constant 6 : index
    %151 = memref.load %arg3[%c2_99, %c6_100] : memref<4x8xf32, #tpu.memory_space<smem>>
    %152 = vector.broadcast %151 : f32 to vector<16x16xf32>
    %153 = arith.mulf %6, %152 : vector<16x16xf32>
    %154 = arith.addf %150, %153 : vector<16x16xf32>
    %c3_101 = arith.constant 3 : index
    %c6_102 = arith.constant 6 : index
    %155 = memref.load %arg3[%c3_101, %c6_102] : memref<4x8xf32, #tpu.memory_space<smem>>
    %156 = vector.broadcast %155 : f32 to vector<16x16xf32>
    %157 = arith.mulf %8, %156 : vector<16x16xf32>
    %158 = arith.addf %154, %157 : vector<16x16xf32>
    %cst_103 = arith.constant dense<0.000000e+00> : vector<16x256xf32>
    %159 = tpu.matmul %158, %0, %cst_103 {dimension_numbers = #tpu.dot_dimension_numbers<[1], [0], [0], [1], [0, 0, 1, 1], [], []>} : vector<16x16xf32>, vector<16x256xf32>, vector<16x256xf32> -> vector<16x256xf32>
    %c0_104 = arith.constant 0 : index
    %c6_105 = arith.constant 6 : index
    %c0_106 = arith.constant 0 : index
    %c0_107 = arith.constant 0 : index
    %160 = vector.load %arg6[%c0_104, %c6_105, %c0_106, %c0_107] : memref<1x8x16x256xf32, #tpu.memory_space<vmem>>, vector<1x1x16x256xf32>
    %161 = vector.shape_cast %160 : vector<1x1x16x256xf32> to vector<16x256xf32>
    %162 = vector.shape_cast %159 : vector<16x256xf32> to vector<1x1x16x256xf32>
    tpu.vector_store %arg6[%c0_104, %c6_105, %c0_106, %c0_107], %162 {strides = array<i32>} : memref<1x8x16x256xf32, #tpu.memory_space<vmem>>, vector<1x1x16x256xf32>,
    %c0_108 = arith.constant 0 : index
    %c7 = arith.constant 7 : index
    %163 = memref.load %arg3[%c0_108, %c7] : memref<4x8xf32, #tpu.memory_space<smem>>
    %164 = vector.broadcast %163 : f32 to vector<16x16xf32>
    %165 = arith.mulf %2, %164 : vector<16x16xf32>
    %c7_109 = arith.constant 7 : index
    %166 = memref.load %arg4[%c7_109] : memref<8xf32, #tpu.memory_space<smem>>
    %167 = vector.broadcast %166 : f32 to vector<16x16xf32>
    %168 = arith.addf %165, %167 : vector<16x16xf32>
    %c1_110 = arith.constant 1 : index
    %c7_111 = arith.constant 7 : index
    %169 = memref.load %arg3[%c1_110, %c7_111] : memref<4x8xf32, #tpu.memory_space<smem>>
    %170 = vector.broadcast %169 : f32 to vector<16x16xf32>
    %171 = arith.mulf %4, %170 : vector<16x16xf32>
    %172 = arith.addf %168, %171 : vector<16x16xf32>
    %c2_112 = arith.constant 2 : index
    %c7_113 = arith.constant 7 : index
    %173 = memref.load %arg3[%c2_112, %c7_113] : memref<4x8xf32, #tpu.memory_space<smem>>
    %174 = vector.broadcast %173 : f32 to vector<16x16xf32>
    %175 = arith.mulf %6, %174 : vector<16x16xf32>
    %176 = arith.addf %172, %175 : vector<16x16xf32>
    %c3_114 = arith.constant 3 : index
    %c7_115 = arith.constant 7 : index
    %177 = memref.load %arg3[%c3_114, %c7_115] : memref<4x8xf32, #tpu.memory_space<smem>>
    %178 = vector.broadcast %177 : f32 to vector<16x16xf32>
    %179 = arith.mulf %8, %178 : vector<16x16xf32>
    %180 = arith.addf %176, %179 : vector<16x16xf32>
    %cst_116 = arith.constant dense<0.000000e+00> : vector<16x256xf32>
    %181 = tpu.matmul %180, %0, %cst_116 {dimension_numbers = #tpu.dot_dimension_numbers<[1], [0], [0], [1], [0, 0, 1, 1], [], []>} : vector<16x16xf32>, vector<16x256xf32>, vector<16x256xf32> -> vector<16x256xf32>
    %c0_117 = arith.constant 0 : index
    %c7_118 = arith.constant 7 : index
    %c0_119 = arith.constant 0 : index
    %c0_120 = arith.constant 0 : index
    %182 = vector.load %arg6[%c0_117, %c7_118, %c0_119, %c0_120] : memref<1x8x16x256xf32, #tpu.memory_space<vmem>>, vector<1x1x16x256xf32>
    %183 = vector.shape_cast %182 : vector<1x1x16x256xf32> to vector<16x256xf32>
    %184 = vector.shape_cast %181 : vector<16x256xf32> to vector<1x1x16x256xf32>
    tpu.vector_store %arg6[%c0_117, %c7_118, %c0_119, %c0_120], %184 {strides = array<i32>} : memref<1x8x16x256xf32, #tpu.memory_space<vmem>>, vector<1x1x16x256xf32>,
    return
  }
  func.func @transform_0(%arg0: i32, %arg1: i32) -> (i32, i32, i32, i32) {
    %c0_i32 = arith.constant 0 : i32
    %c0_i32_0 = arith.constant 0 : i32
    %c0_i32_1 = arith.constant 0 : i32
    return %arg0, %c0_i32, %arg1, %c0_i32_0 : i32, i32, i32, i32
  }
  func.func @transform_1(%arg0: i32, %arg1: i32) -> (i32, i32) {
    %c0_i32 = arith.constant 0 : i32
    %c0_i32_0 = arith.constant 0 : i32
    %c0_i32_1 = arith.constant 0 : i32
    return %c0_i32, %c0_i32_0 : i32, i32
  }
  func.func @transform_2(%arg0: i32, %arg1: i32) -> i32 {
    %c0_i32 = arith.constant 0 : i32
    %c0_i32_0 = arith.constant 0 : i32
    return %c0_i32 : i32
  }
  func.func @transform_3(%arg0: i32, %arg1: i32) -> (i32, i32) {
    %c0_i32 = arith.constant 0 : i32
    %c0_i32_0 = arith.constant 0 : i32
    %c0_i32_1 = arith.constant 0 : i32
    return %c0_i32, %c0_i32_0 : i32, i32
  }
  func.func @transform_4(%arg0: i32, %arg1: i32) -> (i32, i32, i32, i32) {
    %c0_i32 = arith.constant 0 : i32
    %c0_i32_0 = arith.constant 0 : i32
    %c0_i32_1 = arith.constant 0 : i32
    return %arg0, %c0_i32, %arg1, %c0_i32_0 : i32, i32, i32, i32
  }
}

</mosaic_0001>

<llo_original>
// kernel: tpu_custom_call.1
$region0: #{tpu_custom_call.1}
  #allocation0 [shape = 'u32[]', space=smem, size = 0x4, offset = 0x4, fixed_abs, tag = 'smem constant byte address 0x4 - core index']
  #allocation1 [shape = 'u32[144,128]{1,0:T(1,128)}', space=vmem, size = 0x12000, scoped, tag = 'internal scratch']
  %s0 = inlined_call_operand.hbm [shape: f32[2,4,16,16], index: 0, kind: input, shape index: {}]
  %s1 = inlined_call_operand.hbm [shape: f32[4,8], index: 1, kind: input, shape index: {}]
  %s2 = inlined_call_operand.vmem [shape: f32[8], index: 2, kind: input, shape index: {}]
  %s3 = inlined_call_operand.hbm [shape: f32[16,256], index: 3, kind: input, shape index: {}]
  %s4 = inlined_call_operand.hbm [shape: f32[2,8,16,256], index: 4, kind: output, shape index: {}]
  %s5 = sld [smem:[#allocation0]]
  $region65: #{tpu_custom_call.1} parent=0
    _
  %s7 = ssub.s32 1, %s5
  %s8 = scalar_select 0, %s7, %s5
  $region1: #{tpu_custom_call.1} parent=0
    #allocation2 [shape = 'u8[65536]{0}', space=vmem, size = 0x10000, scoped, tag = 'input window, operand 0']
    #allocation3 [shape = 's32[2]{0}', space=sflag, size = 0x8, scoped, tag = 'scoped memory for tpu_custom_call.1']
    #allocation4 [shape = 's32[2]{0}', space=sflag, size = 0x8, scoped, tag = 'scoped memory for tpu_custom_call.1']
    #allocation5 [shape = 's32[2]{0}', space=sflag, size = 0x8, scoped, tag = 'scoped memory for tpu_custom_call.1']
    #allocation6 [shape = 's32[2]{0}', space=sflag, size = 0x8, scoped, tag = 'scoped memory for tpu_custom_call.1']
    #allocation7 [shape = 'u8[2048]{0}', space=smem, size = 0x800, scoped, tag = 'input window, operand 1, single buffered']
    #allocation8 [shape = 'u8[512]{0}', space=smem, size = 0x200, scoped, tag = 'input window, operand 2, single buffered']
    #allocation9 [shape = 'u8[16384]{0}', space=vmem, size = 0x4000, scoped, tag = 'input window, operand 3, single buffered']
    #allocation10 [shape = 's32[1]{0}', space=sflag, size = 0x4, scoped, tag = 'scoped memory for tpu_custom_call.1']
    #allocation11 [shape = 'u8[262144]{0}', space=vmem, size = 0x40000, scoped, tag = 'output window, operand 0']
    %9 = vsyncpa [#allocation3], 0
    %s10 = scalar_lea.sflag [#allocation3], 1
    %11 = vsyncpa %s10, 0
    %12 = vsyncpa [#allocation5], 0
    %13 = vsyncpa [#allocation6], 0
    %14 = vsyncpa [#allocation10], 0
    %15 = vsyncpa [#allocation4], 0
    %s16 = scalar_lea.sflag [#allocation4], 1
    %17 = vsyncpa %s16, 0
    loop: start=0, step=1, limit=4
    $region2: #{tpu_custom_call.1} parent=1 // loop_pre_header
      _
    $region3: #{tpu_custom_call.1} parent=1 // loop_header
      %s19 = sphi 0, %s23
      %p20 = scmp.ge.s32.totalorder %s19, 4
      %s26 = sphi 0, %s38
      %s27 = sphi 0, %s34
      %s28 = sphi 0, %s26
      %s29 = sphi 0, %s27
      %s30 = sphi 0, %s28
      %s31 = sphi 0, %s29
      %s43 = sphi 0, %s45
      %s46 = sphi 0, %s43
      %s47 = sphi 0, %s46
      %s63 = sphi 0, %s47
      %s67 = sphi 0, %s67
      %s69 = sphi 0, %s67
      %s70 = sphi 0, %s69
      %s84 = sphi 0, %s70
      %s88 = sphi 0, %s88
      %s90 = sphi 0, %s88
      %s91 = sphi 0, %s90
      %s105 = sphi 0, %s91
      %s109 = sphi 0, %s109
      %s111 = sphi 0, %s109
      %s112 = sphi 0, %s111
      %s126 = sphi 0, %s112
      %s134 = sphi 0, %s136
      %s137 = sphi 0, %s134
      %s138 = sphi 0, %s137
      %s154 = sphi 0, %s138
    $region4: #{tpu_custom_call.1} parent=1 // loop_header_branch
      %22 = sbr.rel (%p20) target = $region8
    $region5: #{tpu_custom_call.1} parent=1 // loop_body
      %s24 = ssub.s32 %s19, 1
      %s25 = ssub.s32 %s19, 2
      %s32 = sadd.s32 1, %s27
      %p33 = scmp.ge.s32.totalorder %s32, 1
      %s34 = scalar_select %p33, 0, %s32
      %s35 = sadd.s32 1, %s26
      %s36 = scalar_select %p33, %s35, %s26
      %p37 = scmp.ge.s32.totalorder %s36, 2
      %s38 = scalar_select %p37, 0, %s36
      %s39 = ssub.s32 %s26, %s38
      %s40 = ssub.s32 %s27, %s34
      %s41 = sor.u32 %s39, %s40
      %p42 = scmp.eq.s32.totalorder %s41, 0
      %s44 = sadd.s32 %s43, 1
      %s45 = scalar_select %p42, %s43, %s44
      %p48 = pneg %p42
      %p49 = scmp.eq.s32.totalorder %s19, 1
      %p50 = por %p48, %p49
      %p51 = scmp.ne.s32.totalorder %s43, %s46
      %p52 = scmp.eq.s32.totalorder %s19, 0
      %p53 = por %p51, %p52
      %p54 = scmp.ne.s32.totalorder %s43, %s46
      %p55 = scmp.eq.s32.totalorder %s24, 1
      %p56 = por %p54, %p55
      %p57 = scmp.ne.s32.totalorder %s46, %s47
      %p58 = scmp.eq.s32.totalorder %s24, 0
      %p59 = por %p57, %p58
      %p60 = scmp.ne.s32.totalorder %s46, %s47
      %p61 = scmp.eq.s32.totalorder %s25, 1
      %p62 = por %p60, %p61
      %p64 = scmp.ne.s32.totalorder %s47, %s63
      %p65 = scmp.eq.s32.totalorder %s25, 0
      %p66 = por %p64, %p65
      %s68 = sadd.s32 %s67, 1
      %p71 = scmp.eq.s32.totalorder %s19, 1
      %p72 = scmp.ne.s32.totalorder %s67, %s69
      %p73 = scmp.eq.s32.totalorder %s19, 0
      %p74 = por %p72, %p73
      %p75 = scmp.ne.s32.totalorder %s67, %s69
      %p76 = scmp.eq.s32.totalorder %s24, 1
      %p77 = por %p75, %p76
      %p78 = scmp.ne.s32.totalorder %s69, %s70
      %p79 = scmp.eq.s32.totalorder %s24, 0
      %p80 = por %p78, %p79
      %p81 = scmp.ne.s32.totalorder %s69, %s70
      %p82 = scmp.eq.s32.totalorder %s25, 1
      %p83 = por %p81, %p82
      %p85 = scmp.ne.s32.totalorder %s70, %s84
      %p86 = scmp.eq.s32.totalorder %s25, 0
      %p87 = por %p85, %p86
      %s89 = sadd.s32 %s88, 1
      %p92 = scmp.eq.s32.totalorder %s19, 1
      %p93 = scmp.ne.s32.totalorder %s88, %s90
      %p94 = scmp.eq.s32.totalorder %s19, 0
      %p95 = por %p93, %p94
      %p96 = scmp.ne.s32.totalorder %s88, %s90
      %p97 = scmp.eq.s32.totalorder %s24, 1
      %p98 = por %p96, %p97
      %p99 = scmp.ne.s32.totalorder %s90, %s91
      %p100 = scmp.eq.s32.totalorder %s24, 0
      %p101 = por %p99, %p100
      %p102 = scmp.ne.s32.totalorder %s90, %s91
      %p103 = scmp.eq.s32.totalorder %s25, 1
      %p104 = por %p102, %p103
      %p106 = scmp.ne.s32.totalorder %s91, %s105
      %p107 = scmp.eq.s32.totalorder %s25, 0
      %p108 = por %p106, %p107
      %s110 = sadd.s32 %s109, 1
      %p113 = scmp.eq.s32.totalorder %s19, 1
      %p114 = scmp.ne.s32.totalorder %s109, %s111
      %p115 = scmp.eq.s32.totalorder %s19, 0
      %p116 = por %p114, %p115
      %p117 = scmp.ne.s32.totalorder %s109, %s111
      %p118 = scmp.eq.s32.totalorder %s24, 1
      %p119 = por %p117, %p118
      %p120 = scmp.ne.s32.totalorder %s111, %s112
      %p121 = scmp.eq.s32.totalorder %s24, 0
      %p122 = por %p120, %p121
      %p123 = scmp.ne.s32.totalorder %s111, %s112
      %p124 = scmp.eq.s32.totalorder %s25, 1
      %p125 = por %p123, %p124
      %p127 = scmp.ne.s32.totalorder %s112, %s126
      %p128 = scmp.eq.s32.totalorder %s25, 0
      %p129 = por %p127, %p128
      %s130 = ssub.s32 %s26, %s38
      %s131 = ssub.s32 %s27, %s34
      %s132 = sor.u32 %s130, %s131
      %p133 = scmp.eq.s32.totalorder %s132, 0
      %s135 = sadd.s32 %s134, 1
      %s136 = scalar_select %p133, %s134, %s135
      %p139 = pneg %p133
      %p140 = scmp.eq.s32.totalorder %s19, 1
      %p141 = por %p139, %p140
      %p142 = scmp.ne.s32.totalorder %s134, %s137
      %p143 = scmp.eq.s32.totalorder %s19, 0
      %p144 = por %p142, %p143
      %p145 = scmp.ne.s32.totalorder %s134, %s137
      %p146 = scmp.eq.s32.totalorder %s24, 1
      %p147 = por %p145, %p146
      %p148 = scmp.ne.s32.totalorder %s137, %s138
      %p149 = scmp.eq.s32.totalorder %s24, 0
      %p150 = por %p148, %p149
      %p151 = scmp.ne.s32.totalorder %s137, %s138
      %p152 = scmp.eq.s32.totalorder %s25, 1
      %p153 = por %p151, %p152
      %p155 = scmp.ne.s32.totalorder %s138, %s154
      %p156 = scmp.eq.s32.totalorder %s25, 0
      %p157 = por %p155, %p156
      %p158 = scmp.le.s32.totalorder 1, %s19
      %p159 = scmp.lt.s32.totalorder %s19, 3
      %p160 = pnand %p158, %p159
      %p161 = pneg %p160
      // Predicated region
      $region9: #{tpu_custom_call.1} parent=5 // pred_check
        _
      $region10: #{tpu_custom_call.1} parent=5 // pred_check_branch
        %163 = sbr.rel (%p160) target = $region12
      $region11: #{tpu_custom_call.1} parent=5 // pred_region
        %s164 = ssub.s32 %s19, 1
        // Predicated region
        $region13: #{tpu_custom_call.1} parent=11 // pred_check
          %p165 = pneg %p80
        $region14: #{tpu_custom_call.1} parent=11 // pred_check_branch
          %167 = sbr.rel (%p165) target = $region16
        $region15: #{tpu_custom_call.1} parent=11 // pred_region
          %s169 = ssub.s32 64, 64
          %170 = vsyncadd [#allocation5], %s169
          %173 = dma.hbm_to_smem %s1, 64, [#allocation7], [#allocation5]
        $region16: #{tpu_custom_call.1} parent=11 // pred_fallthru
          _
        // Predicated region
        $region17: #{tpu_custom_call.1} parent=11 // pred_check
          %p174 = pneg %p101
        $region18: #{tpu_custom_call.1} parent=11 // pred_check_branch
          %176 = sbr.rel (%p174) target = $region20
        $region19: #{tpu_custom_call.1} parent=11 // pred_region
          %s178 = ssub.s32 16, 16
          %179 = vsyncadd [#allocation6], %s178
          %s181 = sshll.u32 %s2, 4
          %s182 = int_to_ptr.vmem [resolvable:$true] %s181
          %184 = dma.vmem_to_smem %s182, 16, [#allocation8], [#allocation6]
        $region20: #{tpu_custom_call.1} parent=11 // pred_fallthru
          _
        // Predicated region
        $region21: #{tpu_custom_call.1} parent=11 // pred_check
          %p185 = pneg %p122
        $region22: #{tpu_custom_call.1} parent=11 // pred_check_branch
          %187 = sbr.rel (%p185) target = $region24
        $region23: #{tpu_custom_call.1} parent=11 // pred_region
          %s189 = ssub.s32 512, 512
          %190 = vsyncadd [#allocation10], %s189
          %s191 = sshll.u32 [#allocation9], 4
          %s192 = int_to_ptr.vmem [resolvable:$true] %s191
          %197 = dma.hbm_to_vmem [thread:$0]  %s3, 512, %s192, [#allocation10], 256, 256, 16
        $region24: #{tpu_custom_call.1} parent=11 // pred_fallthru
          _
      $region12: #{tpu_custom_call.1} parent=5 // pred_fallthru
        _
      %p198 = scmp.lt.s32.totalorder %s19, 2
      // Predicated region
      $region25: #{tpu_custom_call.1} parent=5 // pred_check
        %p199 = pneg %p198
      $region26: #{tpu_custom_call.1} parent=5 // pred_check_branch
        %201 = sbr.rel (%p199) target = $region28
      $region27: #{tpu_custom_call.1} parent=5 // pred_region
        // Predicated region
        $region29: #{tpu_custom_call.1} parent=27 // pred_check
          %p202 = pneg %p53
        $region30: #{tpu_custom_call.1} parent=27 // pred_check_branch
          %204 = sbr.rel (%p202) target = $region32
        $region31: #{tpu_custom_call.1} parent=27 // pred_region
          %s205 = sand.u32 %s43, 1
          %s206 = scalar_lea.sflag [#allocation3], %s205
          %s207 = sand.u32 %s43, 1
          %s208 = smul.addr %s207, 64
          %s209 = scalar_lea.vmem [#allocation2], %s208
          %s210 = smul.u32 2, %s27
          %s212 = ssub.s32 1024, 1024
          %213 = vsyncadd %s206, %s212
          %s214 = smul.addr %s26, 8
          %s215 = sadd.s32 %s210, %s214
          %s216 = smul.addr %s215, 128
          %s217 = scalar_lea.hbm %s0, %s216
          %s218 = sshll.u32 %s209, 4
          %s219 = int_to_ptr.vmem [resolvable:$true] %s218
          %224 = dma.hbm_to_vmem [thread:$0]  %s217, 1024, %s219, %s206, 128, 128, 8
        $region32: #{tpu_custom_call.1} parent=27 // pred_fallthru
          _
      $region28: #{tpu_custom_call.1} parent=5 // pred_fallthru
        _
      %p225 = scmp.le.s32.totalorder 1, %s19
      %p226 = scmp.lt.s32.totalorder %s19, 3
      %p227 = pnand %p225, %p226
      %p228 = pneg %p227
      // Predicated region
      $region33: #{tpu_custom_call.1} parent=5 // pred_check
        _
      $region34: #{tpu_custom_call.1} parent=5 // pred_check_branch
        %230 = sbr.rel (%p227) target = $region36
      $region35: #{tpu_custom_call.1} parent=5 // pred_region
        %s231 = ssub.s32 %s19, 1
        %s232 = sand.u32 %s46, 1
        %s233 = scalar_lea.sflag [#allocation3], %s232
        %s234 = sand.u32 %s46, 1
        %s235 = smul.addr %s234, 64
        %s236 = scalar_lea.vmem [#allocation2], %s235
        // Predicated region
        $region37: #{tpu_custom_call.1} parent=35 // pred_check
          %p237 = pneg %p59
        $region38: #{tpu_custom_call.1} parent=35 // pred_check_branch
          %239 = sbr.rel (%p237) target = $region40
        $region39: #{tpu_custom_call.1} parent=35 // pred_region
          %240 = dma.done %s233, 1024
        $region40: #{tpu_custom_call.1} parent=35 // pred_fallthru
          _
        // Predicated region
        $region41: #{tpu_custom_call.1} parent=35 // pred_check
          %p241 = pneg %p80
        $region42: #{tpu_custom_call.1} parent=35 // pred_check_branch
          %243 = sbr.rel (%p241) target = $region44
        $region43: #{tpu_custom_call.1} parent=35 // pred_region
          %244 = dma.done [#allocation5], 64
        $region44: #{tpu_custom_call.1} parent=35 // pred_fallthru
          _
        // Predicated region
        $region45: #{tpu_custom_call.1} parent=35 // pred_check
          %p245 = pneg %p101
        $region46: #{tpu_custom_call.1} parent=35 // pred_check_branch
          %247 = sbr.rel (%p245) target = $region48
        $region47: #{tpu_custom_call.1} parent=35 // pred_region
          %248 = dma.done [#allocation6], 16
        $region48: #{tpu_custom_call.1} parent=35 // pred_fallthru
          _
        // Predicated region
        $region49: #{tpu_custom_call.1} parent=35 // pred_check
          %p249 = pneg %p122
        $region50: #{tpu_custom_call.1} parent=35 // pred_check_branch
          %251 = sbr.rel (%p249) target = $region52
        $region51: #{tpu_custom_call.1} parent=35 // pred_region
          %252 = dma.done [#allocation10], 512
        $region52: #{tpu_custom_call.1} parent=35 // pred_fallthru
          _
        %253 = sfence
        %s254 = sand.u32 %s46, 1
        %s255 = scalar_lea.sflag [#allocation3], %s254
        %s256 = sand.u32 %s46, 1
        %s257 = smul.addr %s256, 64
        %s258 = scalar_lea.vmem [#allocation2], %s257
        %p259 = pneg %p59
        %p260 = pneg %p56
        %p261 = pneg %p80
        %p262 = pneg %p77
        %p263 = pneg %p101
        %p264 = pneg %p98
        %p265 = pneg %p122
        %p266 = pneg %p119
        %p267 = pneg %p150
        %p268 = pneg %p147
        %s269 = sand.u32 %s137, 1
        %s270 = scalar_lea.sflag [#allocation4], %s269
        %s271 = sand.u32 %s137, 1
        %s272 = smul.addr %s271, 256
        %s273 = scalar_lea.vmem [#allocation11], %s272
        %s274 = smul.u32 2, %s29
        %s275 = smul.u32 2, %s29
        %v276 = vld [vmem:[#allocation9] sm:$0xff]
        %v277 = vld [vmem:[#allocation9 + $0x8] sm:$0xff]
        %v278 = vld [vmem:[#allocation9 + $0x10] sm:$0xff]
        %v279 = vld [vmem:[#allocation9 + $0x18] sm:$0xff]
        %v280 = vld [vmem:[%s236] sm:$0xff]
        %v281 = vld [vmem:[%s236 + $0x8] sm:$0xff]
        %s282 = scalar_lea.vmem %s236, 16 [#allocation2]
        %v283 = vld [vmem:[%s282] sm:$0xff]
        %v284 = vld [vmem:[%s282 + $0x8] sm:$0xff]
        %s285 = scalar_lea.vmem %s236, 32 [#allocation2]
        %v286 = vld [vmem:[%s285] sm:$0xff]
        %v287 = vld [vmem:[%s285 + $0x8] sm:$0xff]
        %s288 = scalar_lea.vmem %s236, 48 [#allocation2]
        %v289 = vld [vmem:[%s288] sm:$0xff]
        %v290 = vld [vmem:[%s288 + $0x8] sm:$0xff]
        %s291 = sld [smem:[#allocation7]]
        %v292 = vstv %s291
        %v293 = vmul.f32 %v280, %v292
        %v294 = vmul.f32 %v281, %v292
        %s295 = sld [smem:[#allocation8]]
        %v296 = vstv %s295
        %v297 = vadd.f32 %v293, %v296
        %v298 = vadd.f32 %v294, %v296
        %s299 = sld [smem:[#allocation7 + $0x80]]
        %v300 = vstv %s299
        %v301 = vmul.f32 %v283, %v300
        %v302 = vmul.f32 %v284, %v300
        %v303 = vadd.f32 %v297, %v301
        %v304 = vadd.f32 %v298, %v302
        %s305 = sld [smem:[#allocation7 + $0x100]]
        %v306 = vstv %s305
        %v307 = vmul.f32 %v286, %v306
        %v308 = vmul.f32 %v287, %v306
        %v309 = vadd.f32 %v303, %v307
        %v310 = vadd.f32 %v304, %v308
        %s311 = sld [smem:[#allocation7 + $0x180]]
        %v312 = vstv %s311
        %v313 = vmul.f32 %v289, %v312
        %v314 = vmul.f32 %v290, %v312
        %v315 = vadd.f32 %v309, %v313
        %v316 = vadd.f32 %v310, %v314
        %vm317 = vcmask 130048
        %v319 = vsel %vm317, %v315, 0
        %v322 = vsel %vm317, %v316, 0
        %324 = vmatprep.subr.mxu0 0.0
        %325 = vmatpush1.msra.mxu0 0.0
        %326 = vmatprep.subr.mxu0 0.0
        %327 = vmatpush1.msra.mxu0 0.0
        %328 = vmatprep.subr.mxu0 0.0
        %329 = vmatpush1.msra.mxu0 0.0
        %330 = vmatprep.subr.mxu0 0.0
        %331 = vmatpush1.msra.mxu0 0.0
        %332 = vmatprep.subr.mxu0 0.0
        %333 = vmatpush1.msra.mxu0 0.0
        %334 = vmatprep.subr.mxu0 0.0
        %335 = vmatpush1.msra.mxu0 0.0
        %336 = vmatprep.subr.mxu0 0.0
        %337 = vmatpush1.msra.mxu0 0.0
        %338 = vmatprep.subr.mxu0 0.0
        %339 = vmatpush1.msra.mxu0 0.0
        %340 = vmatprep.subr.mxu0 0.0
        %341 = vmatpush1.msra.mxu0 0.0
        %342 = vmatprep.subr.mxu0 0.0
        %343 = vmatpush1.msra.mxu0 0.0
        %344 = vmatprep.subr.mxu0 0.0
        %345 = vmatpush1.msra.mxu0 0.0
        %346 = vmatprep.subr.mxu0 0.0
        %347 = vmatpush1.msra.mxu0 0.0
        %348 = vmatprep.subr.mxu0 0.0
        %349 = vmatpush1.msra.mxu0 0.0
        %350 = vmatprep.subr.mxu0 0.0
        %351 = vmatpush1.msra.mxu0 0.0
        %352 = vmatprep.subr.mxu0 %v279
        %353 = vmatpush1.msra.mxu0 %v278
        %354 = vmatprep.subr.mxu0 %v277
        %355 = vmatpush1.msra.mxu0 %v276
        %356 = vmatprep.subr.mxu0 0.0
        %357 = vmatpush2.msra.mxu0 0.0
        %358 = vmatprep.subr.mxu0 0.0
        %359 = vmatpush2.msra.mxu0 0.0
        %360 = vmatprep.subr.mxu0 0.0
        %361 = vmatpush2.msra.mxu0 0.0
        %362 = vmatprep.subr.mxu0 0.0
        %363 = vmatpush2.msra.mxu0 0.0
        %364 = vmatprep.subr.mxu0 0.0
        %365 = vmatpush2.msra.mxu0 0.0
        %366 = vmatprep.subr.mxu0 0.0
        %367 = vmatpush2.msra.mxu0 0.0
        %368 = vmatprep.subr.mxu0 0.0
        %369 = vmatpush2.msra.mxu0 0.0
        %370 = vmatprep.subr.mxu0 0.0
        %371 = vmatpush2.msra.mxu0 0.0
        %372 = vmatprep.subr.mxu0 0.0
        %373 = vmatpush2.msra.mxu0 0.0
        %374 = vmatprep.subr.mxu0 0.0
        %375 = vmatpush2.msra.mxu0 0.0
        %376 = vmatprep.subr.mxu0 0.0
        %377 = vmatpush2.msra.mxu0 0.0
        %378 = vmatprep.subr.mxu0 0.0
        %379 = vmatpush2.msra.mxu0 0.0
        %380 = vmatprep.subr.mxu0 0.0
        %381 = vmatpush2.msra.mxu0 0.0
        %382 = vmatprep.subr.mxu0 0.0
        %383 = vmatpush2.msra.mxu0 0.0
        %384 = vmatprep.subr.mxu0 0.0
        %385 = vmatpush2.msra.mxu0 0.0
        %386 = vmatprep.subr.mxu0 0.0
        %387 = vmatpush2.msra.mxu0 0.0
        %388 = vmatprep.mubr.f32.mxu0 0.0
        %389 = vmatmul.mubr.f32.gmra.mxu0 %v319
        %v390 = vpop.f32.mrf.mxu0
        %v391 = vadd.f32 0.0, %v390
        %v392 = vpop.f32.mrf.mxu0
        %v393 = vadd.f32 0.0, %v392
        %394 = vmatprep.mubr.f32.mxu0 0.0
        %395 = vmatmul.mubr.f32.gmra.mxu0 %v322
        %v396 = vpop.f32.mrf.mxu0
        %v397 = vadd.f32 0.0, %v396
        %v398 = vpop.f32.mrf.mxu0
        %v399 = vadd.f32 0.0, %v398
        %400 = vdwg.mxu0
        %401 = vst [vmem:[%s273] sm:$0xff] %v391
        %402 = vst [vmem:[%s273 + $0x8] sm:$0xff] %v393
        %403 = vst [vmem:[%s273 + $0x10] sm:$0xff] %v397
        %404 = vst [vmem:[%s273 + $0x18] sm:$0xff] %v399
        %s405 = sld [smem:[#allocation7 + $0x1]]
        %v406 = vstv %s405
        %v407 = vmul.f32 %v280, %v406
        %v408 = vmul.f32 %v281, %v406
        %s409 = sld [smem:[#allocation8 + $0x1]]
        %v410 = vstv %s409
        %v411 = vadd.f32 %v407, %v410
        %v412 = vadd.f32 %v408, %v410
        %s413 = sld [smem:[#allocation7 + $0x81]]
        %v414 = vstv %s413
        %v415 = vmul.f32 %v283, %v414
        %v416 = vmul.f32 %v284, %v414
        %v417 = vadd.f32 %v411, %v415
        %v418 = vadd.f32 %v412, %v416
        %s419 = sld [smem:[#allocation7 + $0x101]]
        %v420 = vstv %s419
        %v421 = vmul.f32 %v286, %v420
        %v422 = vmul.f32 %v287, %v420
        %v423 = vadd.f32 %v417, %v421
        %v424 = vadd.f32 %v418, %v422
        %s425 = sld [smem:[#allocation7 + $0x181]]
        %v426 = vstv %s425
        %v427 = vmul.f32 %v289, %v426
        %v428 = vmul.f32 %v290, %v426
        %v429 = vadd.f32 %v423, %v427
        %v430 = vadd.f32 %v424, %v428
        %v432 = vsel %vm317, %v429, 0
        %v435 = vsel %vm317, %v430, 0
        %437 = vmatprep.subr.mxu0 0.0
        %438 = vmatpush1.msra.mxu0 0.0
        %439 = vmatprep.subr.mxu0 0.0
        %440 = vmatpush1.msra.mxu0 0.0
        %441 = vmatprep.subr.mxu0 0.0
        %442 = vmatpush1.msra.mxu0 0.0
        %443 = vmatprep.subr.mxu0 0.0
        %444 = vmatpush1.msra.mxu0 0.0
        %445 = vmatprep.subr.mxu0 0.0
        %446 = vmatpush1.msra.mxu0 0.0
        %447 = vmatprep.subr.mxu0 0.0
        %448 = vmatpush1.msra.mxu0 0.0
        %449 = vmatprep.subr.mxu0 0.0
        %450 = vmatpush1.msra.mxu0 0.0
        %451 = vmatprep.subr.mxu0 0.0
        %452 = vmatpush1.msra.mxu0 0.0
        %453 = vmatprep.subr.mxu0 0.0
        %454 = vmatpush1.msra.mxu0 0.0
        %455 = vmatprep.subr.mxu0 0.0
        %456 = vmatpush1.msra.mxu0 0.0
        %457 = vmatprep.subr.mxu0 0.0
        %458 = vmatpush1.msra.mxu0 0.0
        %459 = vmatprep.subr.mxu0 0.0
        %460 = vmatpush1.msra.mxu0 0.0
        %461 = vmatprep.subr.mxu0 0.0
        %462 = vmatpush1.msra.mxu0 0.0
        %463 = vmatprep.subr.mxu0 0.0
        %464 = vmatpush1.msra.mxu0 0.0
        %465 = vmatprep.subr.mxu0 %v279
        %466 = vmatpush1.msra.mxu0 %v278
        %467 = vmatprep.subr.mxu0 %v277
        %468 = vmatpush1.msra.mxu0 %v276
        %469 = vmatprep.subr.mxu0 0.0
        %470 = vmatpush2.msra.mxu0 0.0
        %471 = vmatprep.subr.mxu0 0.0
        %472 = vmatpush2.msra.mxu0 0.0
        %473 = vmatprep.subr.mxu0 0.0
        %474 = vmatpush2.msra.mxu0 0.0
        %475 = vmatprep.subr.mxu0 0.0
        %476 = vmatpush2.msra.mxu0 0.0
        %477 = vmatprep.subr.mxu0 0.0
        %478 = vmatpush2.msra.mxu0 0.0
        %479 = vmatprep.subr.mxu0 0.0
        %480 = vmatpush2.msra.mxu0 0.0
        %481 = vmatprep.subr.mxu0 0.0
        %482 = vmatpush2.msra.mxu0 0.0
        %483 = vmatprep.subr.mxu0 0.0
        %484 = vmatpush2.msra.mxu0 0.0
        %485 = vmatprep.subr.mxu0 0.0
        %486 = vmatpush2.msra.mxu0 0.0
        %487 = vmatprep.subr.mxu0 0.0
        %488 = vmatpush2.msra.mxu0 0.0
        %489 = vmatprep.subr.mxu0 0.0
        %490 = vmatpush2.msra.mxu0 0.0
        %491 = vmatprep.subr.mxu0 0.0
        %492 = vmatpush2.msra.mxu0 0.0
        %493 = vmatprep.subr.mxu0 0.0
        %494 = vmatpush2.msra.mxu0 0.0
        %495 = vmatprep.subr.mxu0 0.0
        %496 = vmatpush2.msra.mxu0 0.0
        %497 = vmatprep.subr.mxu0 0.0
        %498 = vmatpush2.msra.mxu0 0.0
        %499 = vmatprep.subr.mxu0 0.0
        %500 = vmatpush2.msra.mxu0 0.0
        %501 = vmatprep.mubr.f32.mxu0 0.0
        %502 = vmatmul.mubr.f32.gmra.mxu0 %v432
        %v503 = vpop.f32.mrf.mxu0
        %v504 = vadd.f32 0.0, %v503
        %v505 = vpop.f32.mrf.mxu0
        %v506 = vadd.f32 0.0, %v505
        %507 = vmatprep.mubr.f32.mxu0 0.0
        %508 = vmatmul.mubr.f32.gmra.mxu0 %v435
        %v509 = vpop.f32.mrf.mxu0
        %v510 = vadd.f32 0.0, %v509
        %v511 = vpop.f32.mrf.mxu0
        %v512 = vadd.f32 0.0, %v511
        %513 = vdwg.mxu0
        %s514 = scalar_lea.vmem %s273, 32 [#allocation11]
        %515 = vst [vmem:[%s514] sm:$0xff] %v504
        %516 = vst [vmem:[%s514 + $0x8] sm:$0xff] %v506
        %517 = vst [vmem:[%s514 + $0x10] sm:$0xff] %v510
        %518 = vst [vmem:[%s514 + $0x18] sm:$0xff] %v512
        %s519 = sld [smem:[#allocation7 + $0x2]]
        %v520 = vstv %s519
        %v521 = vmul.f32 %v280, %v520
        %v522 = vmul.f32 %v281, %v520
        %s523 = sld [smem:[#allocation8 + $0x2]]
        %v524 = vstv %s523
        %v525 = vadd.f32 %v521, %v524
        %v526 = vadd.f32 %v522, %v524
        %s527 = sld [smem:[#allocation7 + $0x82]]
        %v528 = vstv %s527
        %v529 = vmul.f32 %v283, %v528
        %v530 = vmul.f32 %v284, %v528
        %v531 = vadd.f32 %v525, %v529
        %v532 = vadd.f32 %v526, %v530
        %s533 = sld [smem:[#allocation7 + $0x102]]
        %v534 = vstv %s533
        %v535 = vmul.f32 %v286, %v534
        %v536 = vmul.f32 %v287, %v534
        %v537 = vadd.f32 %v531, %v535
        %v538 = vadd.f32 %v532, %v536
        %s539 = sld [smem:[#allocation7 + $0x182]]
        %v540 = vstv %s539
        %v541 = vmul.f32 %v289, %v540
        %v542 = vmul.f32 %v290, %v540
        %v543 = vadd.f32 %v537, %v541
        %v544 = vadd.f32 %v538, %v542
        %v546 = vsel %vm317, %v543, 0
        %v549 = vsel %vm317, %v544, 0
        %551 = vmatprep.subr.mxu0 0.0
        %552 = vmatpush1.msra.mxu0 0.0
        %553 = vmatprep.subr.mxu0 0.0
        %554 = vmatpush1.msra.mxu0 0.0
        %555 = vmatprep.subr.mxu0 0.0
        %556 = vmatpush1.msra.mxu0 0.0
        %557 = vmatprep.subr.mxu0 0.0
        %558 = vmatpush1.msra.mxu0 0.0
        %559 = vmatprep.subr.mxu0 0.0
        %560 = vmatpush1.msra.mxu0 0.0
        %561 = vmatprep.subr.mxu0 0.0
        %562 = vmatpush1.msra.mxu0 0.0
        %563 = vmatprep.subr.mxu0 0.0
        %564 = vmatpush1.msra.mxu0 0.0
        %565 = vmatprep.subr.mxu0 0.0
        %566 = vmatpush1.msra.mxu0 0.0
        %567 = vmatprep.subr.mxu0 0.0
        %568 = vmatpush1.msra.mxu0 0.0
        %569 = vmatprep.subr.mxu0 0.0
        %570 = vmatpush1.msra.mxu0 0.0
        %571 = vmatprep.subr.mxu0 0.0
        %572 = vmatpush1.msra.mxu0 0.0
        %573 = vmatprep.subr.mxu0 0.0
        %574 = vmatpush1.msra.mxu0 0.0
        %575 = vmatprep.subr.mxu0 0.0
        %576 = vmatpush1.msra.mxu0 0.0
        %577 = vmatprep.subr.mxu0 0.0
        %578 = vmatpush1.msra.mxu0 0.0
        %579 = vmatprep.subr.mxu0 %v279
        %580 = vmatpush1.msra.mxu0 %v278
        %581 = vmatprep.subr.mxu0 %v277
        %582 = vmatpush1.msra.mxu0 %v276
        %583 = vmatprep.subr.mxu0 0.0
        %584 = vmatpush2.msra.mxu0 0.0
        %585 = vmatprep.subr.mxu0 0.0
        %586 = vmatpush2.msra.mxu0 0.0
        %587 = vmatprep.subr.mxu0 0.0
        %588 = vmatpush2.msra.mxu0 0.0
        %589 = vmatprep.subr.mxu0 0.0
        %590 = vmatpush2.msra.mxu0 0.0
        %591 = vmatprep.subr.mxu0 0.0
        %592 = vmatpush2.msra.mxu0 0.0
        %593 = vmatprep.subr.mxu0 0.0
        %594 = vmatpush2.msra.mxu0 0.0
        %595 = vmatprep.subr.mxu0 0.0
        %596 = vmatpush2.msra.mxu0 0.0
        %597 = vmatprep.subr.mxu0 0.0
        %598 = vmatpush2.msra.mxu0 0.0
        %599 = vmatprep.subr.mxu0 0.0
        %600 = vmatpush2.msra.mxu0 0.0
        %601 = vmatprep.subr.mxu0 0.0
        %602 = vmatpush2.msra.mxu0 0.0
        %603 = vmatprep.subr.mxu0 0.0
        %604 = vmatpush2.msra.mxu0 0.0
        %605 = vmatprep.subr.mxu0 0.0
        %606 = vmatpush2.msra.mxu0 0.0
        %607 = vmatprep.subr.mxu0 0.0
        %608 = vmatpush2.msra.mxu0 0.0
        %609 = vmatprep.subr.mxu0 0.0
        %610 = vmatpush2.msra.mxu0 0.0
        %611 = vmatprep.subr.mxu0 0.0
        %612 = vmatpush2.msra.mxu0 0.0
        %613 = vmatprep.subr.mxu0 0.0
        %614 = vmatpush2.msra.mxu0 0.0
        %615 = vmatprep.mubr.f32.mxu0 0.0
        %616 = vmatmul.mubr.f32.gmra.mxu0 %v546
        %v617 = vpop.f32.mrf.mxu0
        %v618 = vadd.f32 0.0, %v617
        %v619 = vpop.f32.mrf.mxu0
        %v620 = vadd.f32 0.0, %v619
        %621 = vmatprep.mubr.f32.mxu0 0.0
        %622 = vmatmul.mubr.f32.gmra.mxu0 %v549
        %v623 = vpop.f32.mrf.mxu0
        %v624 = vadd.f32 0.0, %v623
        %v625 = vpop.f32.mrf.mxu0
        %v626 = vadd.f32 0.0, %v625
        %627 = vdwg.mxu0
        %s628 = scalar_lea.vmem %s273, 64 [#allocation11]
        %629 = vst [vmem:[%s628] sm:$0xff] %v618
        %630 = vst [vmem:[%s628 + $0x8] sm:$0xff] %v620
        %631 = vst [vmem:[%s628 + $0x10] sm:$0xff] %v624
        %632 = vst [vmem:[%s628 + $0x18] sm:$0xff] %v626
        %s633 = sld [smem:[#allocation7 + $0x3]]
        %v634 = vstv %s633
        %v635 = vmul.f32 %v280, %v634
        %v636 = vmul.f32 %v281, %v634
        %s637 = sld [smem:[#allocation8 + $0x3]]
        %v638 = vstv %s637
        %v639 = vadd.f32 %v635, %v638
        %v640 = vadd.f32 %v636, %v638
        %s641 = sld [smem:[#allocation7 + $0x83]]
        %v642 = vstv %s641
        %v643 = vmul.f32 %v283, %v642
        %v644 = vmul.f32 %v284, %v642
        %v645 = vadd.f32 %v639, %v643
        %v646 = vadd.f32 %v640, %v644
        %s647 = sld [smem:[#allocation7 + $0x103]]
        %v648 = vstv %s647
        %v649 = vmul.f32 %v286, %v648
        %v650 = vmul.f32 %v287, %v648
        %v651 = vadd.f32 %v645, %v649
        %v652 = vadd.f32 %v646, %v650
        %s653 = sld [smem:[#allocation7 + $0x183]]
        %v654 = vstv %s653
        %v655 = vmul.f32 %v289, %v654
        %v656 = vmul.f32 %v290, %v654
        %v657 = vadd.f32 %v651, %v655
        %v658 = vadd.f32 %v652, %v656
        %v660 = vsel %vm317, %v657, 0
        %v663 = vsel %vm317, %v658, 0
        %665 = vmatprep.subr.mxu0 0.0
        %666 = vmatpush1.msra.mxu0 0.0
        %667 = vmatprep.subr.mxu0 0.0
        %668 = vmatpush1.msra.mxu0 0.0
        %669 = vmatprep.subr.mxu0 0.0
        %670 = vmatpush1.msra.mxu0 0.0
        %671 = vmatprep.subr.mxu0 0.0
        %672 = vmatpush1.msra.mxu0 0.0
        %673 = vmatprep.subr.mxu0 0.0
        %674 = vmatpush1.msra.mxu0 0.0
        %675 = vmatprep.subr.mxu0 0.0
        %676 = vmatpush1.msra.mxu0 0.0
        %677 = vmatprep.subr.mxu0 0.0
        %678 = vmatpush1.msra.mxu0 0.0
        %679 = vmatprep.subr.mxu0 0.0
        %680 = vmatpush1.msra.mxu0 0.0
        %681 = vmatprep.subr.mxu0 0.0
        %682 = vmatpush1.msra.mxu0 0.0
        %683 = vmatprep.subr.mxu0 0.0
        %684 = vmatpush1.msra.mxu0 0.0
        %685 = vmatprep.subr.mxu0 0.0
        %686 = vmatpush1.msra.mxu0 0.0
        %687 = vmatprep.subr.mxu0 0.0
        %688 = vmatpush1.msra.mxu0 0.0
        %689 = vmatprep.subr.mxu0 0.0
        %690 = vmatpush1.msra.mxu0 0.0
        %691 = vmatprep.subr.mxu0 0.0
        %692 = vmatpush1.msra.mxu0 0.0
        %693 = vmatprep.subr.mxu0 %v279
        %694 = vmatpush1.msra.mxu0 %v278
        %695 = vmatprep.subr.mxu0 %v277
        %696 = vmatpush1.msra.mxu0 %v276
        %697 = vmatprep.subr.mxu0 0.0
        %698 = vmatpush2.msra.mxu0 0.0
        %699 = vmatprep.subr.mxu0 0.0
        %700 = vmatpush2.msra.mxu0 0.0
        %701 = vmatprep.subr.mxu0 0.0
        %702 = vmatpush2.msra.mxu0 0.0
        %703 = vmatprep.subr.mxu0 0.0
        %704 = vmatpush2.msra.mxu0 0.0
        %705 = vmatprep.subr.mxu0 0.0
        %706 = vmatpush2.msra.mxu0 0.0
        %707 = vmatprep.subr.mxu0 0.0
        %708 = vmatpush2.msra.mxu0 0.0
        %709 = vmatprep.subr.mxu0 0.0
        %710 = vmatpush2.msra.mxu0 0.0
        %711 = vmatprep.subr.mxu0 0.0
        %712 = vmatpush2.msra.mxu0 0.0
        %713 = vmatprep.subr.mxu0 0.0
        %714 = vmatpush2.msra.mxu0 0.0
        %715 = vmatprep.subr.mxu0 0.0
        %716 = vmatpush2.msra.mxu0 0.0
        %717 = vmatprep.subr.mxu0 0.0
        %718 = vmatpush2.msra.mxu0 0.0
        %719 = vmatprep.subr.mxu0 0.0
        %720 = vmatpush2.msra.mxu0 0.0
        %721 = vmatprep.subr.mxu0 0.0
        %722 = vmatpush2.msra.mxu0 0.0
        %723 = vmatprep.subr.mxu0 0.0
        %724 = vmatpush2.msra.mxu0 0.0
        %725 = vmatprep.subr.mxu0 0.0
        %726 = vmatpush2.msra.mxu0 0.0
        %727 = vmatprep.subr.mxu0 0.0
        %728 = vmatpush2.msra.mxu0 0.0
        %729 = vmatprep.mubr.f32.mxu0 0.0
        %730 = vmatmul.mubr.f32.gmra.mxu0 %v660
        %v731 = vpop.f32.mrf.mxu0
        %v732 = vadd.f32 0.0, %v731
        %v733 = vpop.f32.mrf.mxu0
        %v734 = vadd.f32 0.0, %v733
        %735 = vmatprep.mubr.f32.mxu0 0.0
        %736 = vmatmul.mubr.f32.gmra.mxu0 %v663
        %v737 = vpop.f32.mrf.mxu0
        %v738 = vadd.f32 0.0, %v737
        %v739 = vpop.f32.mrf.mxu0
        %v740 = vadd.f32 0.0, %v739
        %741 = vdwg.mxu0
        %s742 = scalar_lea.vmem %s273, 96 [#allocation11]
        %743 = vst [vmem:[%s742] sm:$0xff] %v732
        %744 = vst [vmem:[%s742 + $0x8] sm:$0xff] %v734
        %745 = vst [vmem:[%s742 + $0x10] sm:$0xff] %v738
        %746 = vst [vmem:[%s742 + $0x18] sm:$0xff] %v740
        %s747 = sld [smem:[#allocation7 + $0x4]]
        %v748 = vstv %s747
        %v749 = vmul.f32 %v280, %v748
        %v750 = vmul.f32 %v281, %v748
        %s751 = sld [smem:[#allocation8 + $0x4]]
        %v752 = vstv %s751
        %v753 = vadd.f32 %v749, %v752
        %v754 = vadd.f32 %v750, %v752
        %s755 = sld [smem:[#allocation7 + $0x84]]
        %v756 = vstv %s755
        %v757 = vmul.f32 %v283, %v756
        %v758 = vmul.f32 %v284, %v756
        %v759 = vadd.f32 %v753, %v757
        %v760 = vadd.f32 %v754, %v758
        %s761 = sld [smem:[#allocation7 + $0x104]]
        %v762 = vstv %s761
        %v763 = vmul.f32 %v286, %v762
        %v764 = vmul.f32 %v287, %v762
        %v765 = vadd.f32 %v759, %v763
        %v766 = vadd.f32 %v760, %v764
        %s767 = sld [smem:[#allocation7 + $0x184]]
        %v768 = vstv %s767
        %v769 = vmul.f32 %v289, %v768
        %v770 = vmul.f32 %v290, %v768
        %v771 = vadd.f32 %v765, %v769
        %v772 = vadd.f32 %v766, %v770
        %v774 = vsel %vm317, %v771, 0
        %v777 = vsel %vm317, %v772, 0
        %779 = vmatprep.subr.mxu0 0.0
        %780 = vmatpush1.msra.mxu0 0.0
        %781 = vmatprep.subr.mxu0 0.0
        %782 = vmatpush1.msra.mxu0 0.0
        %783 = vmatprep.subr.mxu0 0.0
        %784 = vmatpush1.msra.mxu0 0.0
        %785 = vmatprep.subr.mxu0 0.0
        %786 = vmatpush1.msra.mxu0 0.0
        %787 = vmatprep.subr.mxu0 0.0
        %788 = vmatpush1.msra.mxu0 0.0
        %789 = vmatprep.subr.mxu0 0.0
        %790 = vmatpush1.msra.mxu0 0.0
        %791 = vmatprep.subr.mxu0 0.0
        %792 = vmatpush1.msra.mxu0 0.0
        %793 = vmatprep.subr.mxu0 0.0
        %794 = vmatpush1.msra.mxu0 0.0
        %795 = vmatprep.subr.mxu0 0.0
        %796 = vmatpush1.msra.mxu0 0.0
        %797 = vmatprep.subr.mxu0 0.0
        %798 = vmatpush1.msra.mxu0 0.0
        %799 = vmatprep.subr.mxu0 0.0
        %800 = vmatpush1.msra.mxu0 0.0
        %801 = vmatprep.subr.mxu0 0.0
        %802 = vmatpush1.msra.mxu0 0.0
        %803 = vmatprep.subr.mxu0 0.0
        %804 = vmatpush1.msra.mxu0 0.0
        %805 = vmatprep.subr.mxu0 0.0
        %806 = vmatpush1.msra.mxu0 0.0
        %807 = vmatprep.subr.mxu0 %v279
        %808 = vmatpush1.msra.mxu0 %v278
        %809 = vmatprep.subr.mxu0 %v277
        %810 = vmatpush1.msra.mxu0 %v276
        %811 = vmatprep.subr.mxu0 0.0
        %812 = vmatpush2.msra.mxu0 0.0
        %813 = vmatprep.subr.mxu0 0.0
        %814 = vmatpush2.msra.mxu0 0.0
        %815 = vmatprep.subr.mxu0 0.0
        %816 = vmatpush2.msra.mxu0 0.0
        %817 = vmatprep.subr.mxu0 0.0
        %818 = vmatpush2.msra.mxu0 0.0
        %819 = vmatprep.subr.mxu0 0.0
        %820 = vmatpush2.msra.mxu0 0.0
        %821 = vmatprep.subr.mxu0 0.0
        %822 = vmatpush2.msra.mxu0 0.0
        %823 = vmatprep.subr.mxu0 0.0
        %824 = vmatpush2.msra.mxu0 0.0
        %825 = vmatprep.subr.mxu0 0.0
        %826 = vmatpush2.msra.mxu0 0.0
        %827 = vmatprep.subr.mxu0 0.0
        %828 = vmatpush2.msra.mxu0 0.0
        %829 = vmatprep.subr.mxu0 0.0
        %830 = vmatpush2.msra.mxu0 0.0
        %831 = vmatprep.subr.mxu0 0.0
        %832 = vmatpush2.msra.mxu0 0.0
        %833 = vmatprep.subr.mxu0 0.0
        %834 = vmatpush2.msra.mxu0 0.0
        %835 = vmatprep.subr.mxu0 0.0
        %836 = vmatpush2.msra.mxu0 0.0
        %837 = vmatprep.subr.mxu0 0.0
        %838 = vmatpush2.msra.mxu0 0.0
        %839 = vmatprep.subr.mxu0 0.0
        %840 = vmatpush2.msra.mxu0 0.0
        %841 = vmatprep.subr.mxu0 0.0
        %842 = vmatpush2.msra.mxu0 0.0
        %843 = vmatprep.mubr.f32.mxu0 0.0
        %844 = vmatmul.mubr.f32.gmra.mxu0 %v774
        %v845 = vpop.f32.mrf.mxu0
        %v846 = vadd.f32 0.0, %v845
        %v847 = vpop.f32.mrf.mxu0
        %v848 = vadd.f32 0.0, %v847
        %849 = vmatprep.mubr.f32.mxu0 0.0
        %850 = vmatmul.mubr.f32.gmra.mxu0 %v777
        %v851 = vpop.f32.mrf.mxu0
        %v852 = vadd.f32 0.0, %v851
        %v853 = vpop.f32.mrf.mxu0
        %v854 = vadd.f32 0.0, %v853
        %855 = vdwg.mxu0
        %s856 = scalar_lea.vmem %s273, 128 [#allocation11]
        %857 = vst [vmem:[%s856] sm:$0xff] %v846
        %858 = vst [vmem:[%s856 + $0x8] sm:$0xff] %v848
        %859 = vst [vmem:[%s856 + $0x10] sm:$0xff] %v852
        %860 = vst [vmem:[%s856 + $0x18] sm:$0xff] %v854
        %s861 = sld [smem:[#allocation7 + $0x5]]
        %v862 = vstv %s861
        %v863 = vmul.f32 %v280, %v862
        %v864 = vmul.f32 %v281, %v862
        %s865 = sld [smem:[#allocation8 + $0x5]]
        %v866 = vstv %s865
        %v867 = vadd.f32 %v863, %v866
        %v868 = vadd.f32 %v864, %v866
        %s869 = sld [smem:[#allocation7 + $0x85]]
        %v870 = vstv %s869
        %v871 = vmul.f32 %v283, %v870
        %v872 = vmul.f32 %v284, %v870
        %v873 = vadd.f32 %v867, %v871
        %v874 = vadd.f32 %v868, %v872
        %s875 = sld [smem:[#allocation7 + $0x105]]
        %v876 = vstv %s875
        %v877 = vmul.f32 %v286, %v876
        %v878 = vmul.f32 %v287, %v876
        %v879 = vadd.f32 %v873, %v877
        %v880 = vadd.f32 %v874, %v878
        %s881 = sld [smem:[#allocation7 + $0x185]]
        %v882 = vstv %s881
        %v883 = vmul.f32 %v289, %v882
        %v884 = vmul.f32 %v290, %v882
        %v885 = vadd.f32 %v879, %v883
        %v886 = vadd.f32 %v880, %v884
        %v888 = vsel %vm317, %v885, 0
        %v891 = vsel %vm317, %v886, 0
        %893 = vmatprep.subr.mxu0 0.0
        %894 = vmatpush1.msra.mxu0 0.0
        %895 = vmatprep.subr.mxu0 0.0
        %896 = vmatpush1.msra.mxu0 0.0
        %897 = vmatprep.subr.mxu0 0.0
        %898 = vmatpush1.msra.mxu0 0.0
        %899 = vmatprep.subr.mxu0 0.0
        %900 = vmatpush1.msra.mxu0 0.0
        %901 = vmatprep.subr.mxu0 0.0
        %902 = vmatpush1.msra.mxu0 0.0
        %903 = vmatprep.subr.mxu0 0.0
        %904 = vmatpush1.msra.mxu0 0.0
        %905 = vmatprep.subr.mxu0 0.0
        %906 = vmatpush1.msra.mxu0 0.0
        %907 = vmatprep.subr.mxu0 0.0
        %908 = vmatpush1.msra.mxu0 0.0
        %909 = vmatprep.subr.mxu0 0.0
        %910 = vmatpush1.msra.mxu0 0.0
        %911 = vmatprep.subr.mxu0 0.0
        %912 = vmatpush1.msra.mxu0 0.0
        %913 = vmatprep.subr.mxu0 0.0
        %914 = vmatpush1.msra.mxu0 0.0
        %915 = vmatprep.subr.mxu0 0.0
        %916 = vmatpush1.msra.mxu0 0.0
        %917 = vmatprep.subr.mxu0 0.0
        %918 = vmatpush1.msra.mxu0 0.0
        %919 = vmatprep.subr.mxu0 0.0
        %920 = vmatpush1.msra.mxu0 0.0
        %921 = vmatprep.subr.mxu0 %v279
        %922 = vmatpush1.msra.mxu0 %v278
        %923 = vmatprep.subr.mxu0 %v277
        %924 = vmatpush1.msra.mxu0 %v276
        %925 = vmatprep.subr.mxu0 0.0
        %926 = vmatpush2.msra.mxu0 0.0
        %927 = vmatprep.subr.mxu0 0.0
        %928 = vmatpush2.msra.mxu0 0.0
        %929 = vmatprep.subr.mxu0 0.0
        %930 = vmatpush2.msra.mxu0 0.0
        %931 = vmatprep.subr.mxu0 0.0
        %932 = vmatpush2.msra.mxu0 0.0
        %933 = vmatprep.subr.mxu0 0.0
        %934 = vmatpush2.msra.mxu0 0.0
        %935 = vmatprep.subr.mxu0 0.0
        %936 = vmatpush2.msra.mxu0 0.0
        %937 = vmatprep.subr.mxu0 0.0
        %938 = vmatpush2.msra.mxu0 0.0
        %939 = vmatprep.subr.mxu0 0.0
        %940 = vmatpush2.msra.mxu0 0.0
        %941 = vmatprep.subr.mxu0 0.0
        %942 = vmatpush2.msra.mxu0 0.0
        %943 = vmatprep.subr.mxu0 0.0
        %944 = vmatpush2.msra.mxu0 0.0
        %945 = vmatprep.subr.mxu0 0.0
        %946 = vmatpush2.msra.mxu0 0.0
        %947 = vmatprep.subr.mxu0 0.0
        %948 = vmatpush2.msra.mxu0 0.0
        %949 = vmatprep.subr.mxu0 0.0
        %950 = vmatpush2.msra.mxu0 0.0
        %951 = vmatprep.subr.mxu0 0.0
        %952 = vmatpush2.msra.mxu0 0.0
        %953 = vmatprep.subr.mxu0 0.0
        %954 = vmatpush2.msra.mxu0 0.0
        %955 = vmatprep.subr.mxu0 0.0
        %956 = vmatpush2.msra.mxu0 0.0
        %957 = vmatprep.mubr.f32.mxu0 0.0
        %958 = vmatmul.mubr.f32.gmra.mxu0 %v888
        %v959 = vpop.f32.mrf.mxu0
        %v960 = vadd.f32 0.0, %v959
        %v961 = vpop.f32.mrf.mxu0
        %v962 = vadd.f32 0.0, %v961
        %963 = vmatprep.mubr.f32.mxu0 0.0
        %964 = vmatmul.mubr.f32.gmra.mxu0 %v891
        %v965 = vpop.f32.mrf.mxu0
        %v966 = vadd.f32 0.0, %v965
        %v967 = vpop.f32.mrf.mxu0
        %v968 = vadd.f32 0.0, %v967
        %969 = vdwg.mxu0
        %s970 = scalar_lea.vmem %s273, 160 [#allocation11]
        %971 = vst [vmem:[%s970] sm:$0xff] %v960
        %972 = vst [vmem:[%s970 + $0x8] sm:$0xff] %v962
        %973 = vst [vmem:[%s970 + $0x10] sm:$0xff] %v966
        %974 = vst [vmem:[%s970 + $0x18] sm:$0xff] %v968
        %s975 = sld [smem:[#allocation7 + $0x6]]
        %v976 = vstv %s975
        %v977 = vmul.f32 %v280, %v976
        %v978 = vmul.f32 %v281, %v976
        %s979 = sld [smem:[#allocation8 + $0x6]]
        %v980 = vstv %s979
        %v981 = vadd.f32 %v977, %v980
        %v982 = vadd.f32 %v978, %v980
        %s983 = sld [smem:[#allocation7 + $0x86]]
        %v984 = vstv %s983
        %v985 = vmul.f32 %v283, %v984
        %v986 = vmul.f32 %v284, %v984
        %v987 = vadd.f32 %v981, %v985
        %v988 = vadd.f32 %v982, %v986
        %s989 = sld [smem:[#allocation7 + $0x106]]
        %v990 = vstv %s989
        %v991 = vmul.f32 %v286, %v990
        %v992 = vmul.f32 %v287, %v990
        %v993 = vadd.f32 %v987, %v991
        %v994 = vadd.f32 %v988, %v992
        %s995 = sld [smem:[#allocation7 + $0x186]]
        %v996 = vstv %s995
        %v997 = vmul.f32 %v289, %v996
        %v998 = vmul.f32 %v290, %v996
        %v999 = vadd.f32 %v993, %v997
        %v1000 = vadd.f32 %v994, %v998
        %v1002 = vsel %vm317, %v999, 0
        %v1005 = vsel %vm317, %v1000, 0
        %1007 = vmatprep.subr.mxu0 0.0
        %1008 = vmatpush1.msra.mxu0 0.0
        %1009 = vmatprep.subr.mxu0 0.0
        %1010 = vmatpush1.msra.mxu0 0.0
        %1011 = vmatprep.subr.mxu0 0.0
        %1012 = vmatpush1.msra.mxu0 0.0
        %1013 = vmatprep.subr.mxu0 0.0
        %1014 = vmatpush1.msra.mxu0 0.0
        %1015 = vmatprep.subr.mxu0 0.0
        %1016 = vmatpush1.msra.mxu0 0.0
        %1017 = vmatprep.subr.mxu0 0.0
        %1018 = vmatpush1.msra.mxu0 0.0
        %1019 = vmatprep.subr.mxu0 0.0
        %1020 = vmatpush1.msra.mxu0 0.0
        %1021 = vmatprep.subr.mxu0 0.0
        %1022 = vmatpush1.msra.mxu0 0.0
        %1023 = vmatprep.subr.mxu0 0.0
        %1024 = vmatpush1.msra.mxu0 0.0
        %1025 = vmatprep.subr.mxu0 0.0
        %1026 = vmatpush1.msra.mxu0 0.0
        %1027 = vmatprep.subr.mxu0 0.0
        %1028 = vmatpush1.msra.mxu0 0.0
        %1029 = vmatprep.subr.mxu0 0.0
        %1030 = vmatpush1.msra.mxu0 0.0
        %1031 = vmatprep.subr.mxu0 0.0
        %1032 = vmatpush1.msra.mxu0 0.0
        %1033 = vmatprep.subr.mxu0 0.0
        %1034 = vmatpush1.msra.mxu0 0.0
        %1035 = vmatprep.subr.mxu0 %v279
        %1036 = vmatpush1.msra.mxu0 %v278
        %1037 = vmatprep.subr.mxu0 %v277
        %1038 = vmatpush1.msra.mxu0 %v276
        %1039 = vmatprep.subr.mxu0 0.0
        %1040 = vmatpush2.msra.mxu0 0.0
        %1041 = vmatprep.subr.mxu0 0.0
        %1042 = vmatpush2.msra.mxu0 0.0
        %1043 = vmatprep.subr.mxu0 0.0
        %1044 = vmatpush2.msra.mxu0 0.0
        %1045 = vmatprep.subr.mxu0 0.0
        %1046 = vmatpush2.msra.mxu0 0.0
        %1047 = vmatprep.subr.mxu0 0.0
        %1048 = vmatpush2.msra.mxu0 0.0
        %1049 = vmatprep.subr.mxu0 0.0
        %1050 = vmatpush2.msra.mxu0 0.0
        %1051 = vmatprep.subr.mxu0 0.0
        %1052 = vmatpush2.msra.mxu0 0.0
        %1053 = vmatprep.subr.mxu0 0.0
        %1054 = vmatpush2.msra.mxu0 0.0
        %1055 = vmatprep.subr.mxu0 0.0
        %1056 = vmatpush2.msra.mxu0 0.0
        %1057 = vmatprep.subr.mxu0 0.0
        %1058 = vmatpush2.msra.mxu0 0.0
        %1059 = vmatprep.subr.mxu0 0.0
        %1060 = vmatpush2.msra.mxu0 0.0
        %1061 = vmatprep.subr.mxu0 0.0
        %1062 = vmatpush2.msra.mxu0 0.0
        %1063 = vmatprep.subr.mxu0 0.0
        %1064 = vmatpush2.msra.mxu0 0.0
        %1065 = vmatprep.subr.mxu0 0.0
        %1066 = vmatpush2.msra.mxu0 0.0
        %1067 = vmatprep.subr.mxu0 0.0
        %1068 = vmatpush2.msra.mxu0 0.0
        %1069 = vmatprep.subr.mxu0 0.0
        %1070 = vmatpush2.msra.mxu0 0.0
        %1071 = vmatprep.mubr.f32.mxu0 0.0
        %1072 = vmatmul.mubr.f32.gmra.mxu0 %v1002
        %v1073 = vpop.f32.mrf.mxu0
        %v1074 = vadd.f32 0.0, %v1073
        %v1075 = vpop.f32.mrf.mxu0
        %v1076 = vadd.f32 0.0, %v1075
        %1077 = vmatprep.mubr.f32.mxu0 0.0
        %1078 = vmatmul.mubr.f32.gmra.mxu0 %v1005
        %v1079 = vpop.f32.mrf.mxu0
        %v1080 = vadd.f32 0.0, %v1079
        %v1081 = vpop.f32.mrf.mxu0
        %v1082 = vadd.f32 0.0, %v1081
        %1083 = vdwg.mxu0
        %s1084 = scalar_lea.vmem %s273, 192 [#allocation11]
        %1085 = vst [vmem:[%s1084] sm:$0xff] %v1074
        %1086 = vst [vmem:[%s1084 + $0x8] sm:$0xff] %v1076
        %1087 = vst [vmem:[%s1084 + $0x10] sm:$0xff] %v1080
        %1088 = vst [vmem:[%s1084 + $0x18] sm:$0xff] %v1082
        %s1089 = sld [smem:[#allocation7 + $0x7]]
        %v1090 = vstv %s1089
        %v1091 = vmul.f32 %v280, %v1090
        %v1092 = vmul.f32 %v281, %v1090
        %s1093 = sld [smem:[#allocation8 + $0x7]]
        %v1094 = vstv %s1093
        %v1095 = vadd.f32 %v1091, %v1094
        %v1096 = vadd.f32 %v1092, %v1094
        %s1097 = sld [smem:[#allocation7 + $0x87]]
        %v1098 = vstv %s1097
        %v1099 = vmul.f32 %v283, %v1098
        %v1100 = vmul.f32 %v284, %v1098
        %v1101 = vadd.f32 %v1095, %v1099
        %v1102 = vadd.f32 %v1096, %v1100
        %s1103 = sld [smem:[#allocation7 + $0x107]]
        %v1104 = vstv %s1103
        %v1105 = vmul.f32 %v286, %v1104
        %v1106 = vmul.f32 %v287, %v1104
        %v1107 = vadd.f32 %v1101, %v1105
        %v1108 = vadd.f32 %v1102, %v1106
        %s1109 = sld [smem:[#allocation7 + $0x187]]
        %v1110 = vstv %s1109
        %v1111 = vmul.f32 %v289, %v1110
        %v1112 = vmul.f32 %v290, %v1110
        %v1113 = vadd.f32 %v1107, %v1111
        %v1114 = vadd.f32 %v1108, %v1112
        %v1116 = vsel %vm317, %v1113, 0
        %v1119 = vsel %vm317, %v1114, 0
        %1121 = vmatprep.subr.mxu0 0.0
        %1122 = vmatpush1.msra.mxu0 0.0
        %1123 = vmatprep.subr.mxu0 0.0
        %1124 = vmatpush1.msra.mxu0 0.0
        %1125 = vmatprep.subr.mxu0 0.0
        %1126 = vmatpush1.msra.mxu0 0.0
        %1127 = vmatprep.subr.mxu0 0.0
        %1128 = vmatpush1.msra.mxu0 0.0
        %1129 = vmatprep.subr.mxu0 0.0
        %1130 = vmatpush1.msra.mxu0 0.0
        %1131 = vmatprep.subr.mxu0 0.0
        %1132 = vmatpush1.msra.mxu0 0.0
        %1133 = vmatprep.subr.mxu0 0.0
        %1134 = vmatpush1.msra.mxu0 0.0
        %1135 = vmatprep.subr.mxu0 0.0
        %1136 = vmatpush1.msra.mxu0 0.0
        %1137 = vmatprep.subr.mxu0 0.0
        %1138 = vmatpush1.msra.mxu0 0.0
        %1139 = vmatprep.subr.mxu0 0.0
        %1140 = vmatpush1.msra.mxu0 0.0
        %1141 = vmatprep.subr.mxu0 0.0
        %1142 = vmatpush1.msra.mxu0 0.0
        %1143 = vmatprep.subr.mxu0 0.0
        %1144 = vmatpush1.msra.mxu0 0.0
        %1145 = vmatprep.subr.mxu0 0.0
        %1146 = vmatpush1.msra.mxu0 0.0
        %1147 = vmatprep.subr.mxu0 0.0
        %1148 = vmatpush1.msra.mxu0 0.0
        %1149 = vmatprep.subr.mxu0 %v279
        %1150 = vmatpush1.msra.mxu0 %v278
        %1151 = vmatprep.subr.mxu0 %v277
        %1152 = vmatpush1.msra.mxu0 %v276
        %1153 = vmatprep.subr.mxu0 0.0
        %1154 = vmatpush2.msra.mxu0 0.0
        %1155 = vmatprep.subr.mxu0 0.0
        %1156 = vmatpush2.msra.mxu0 0.0
        %1157 = vmatprep.subr.mxu0 0.0
        %1158 = vmatpush2.msra.mxu0 0.0
        %1159 = vmatprep.subr.mxu0 0.0
        %1160 = vmatpush2.msra.mxu0 0.0
        %1161 = vmatprep.subr.mxu0 0.0
        %1162 = vmatpush2.msra.mxu0 0.0
        %1163 = vmatprep.subr.mxu0 0.0
        %1164 = vmatpush2.msra.mxu0 0.0
        %1165 = vmatprep.subr.mxu0 0.0
        %1166 = vmatpush2.msra.mxu0 0.0
        %1167 = vmatprep.subr.mxu0 0.0
        %1168 = vmatpush2.msra.mxu0 0.0
        %1169 = vmatprep.subr.mxu0 0.0
        %1170 = vmatpush2.msra.mxu0 0.0
        %1171 = vmatprep.subr.mxu0 0.0
        %1172 = vmatpush2.msra.mxu0 0.0
        %1173 = vmatprep.subr.mxu0 0.0
        %1174 = vmatpush2.msra.mxu0 0.0
        %1175 = vmatprep.subr.mxu0 0.0
        %1176 = vmatpush2.msra.mxu0 0.0
        %1177 = vmatprep.subr.mxu0 0.0
        %1178 = vmatpush2.msra.mxu0 0.0
        %1179 = vmatprep.subr.mxu0 0.0
        %1180 = vmatpush2.msra.mxu0 0.0
        %1181 = vmatprep.subr.mxu0 0.0
        %1182 = vmatpush2.msra.mxu0 0.0
        %1183 = vmatprep.subr.mxu0 0.0
        %1184 = vmatpush2.msra.mxu0 0.0
        %1185 = vmatprep.mubr.f32.mxu0 0.0
        %1186 = vmatmul.mubr.f32.gmra.mxu0 %v1116
        %v1187 = vpop.f32.mrf.mxu0
        %v1188 = vadd.f32 0.0, %v1187
        %v1189 = vpop.f32.mrf.mxu0
        %v1190 = vadd.f32 0.0, %v1189
        %1191 = vmatprep.mubr.f32.mxu0 0.0
        %1192 = vmatmul.mubr.f32.gmra.mxu0 %v1119
        %v1193 = vpop.f32.mrf.mxu0
        %v1194 = vadd.f32 0.0, %v1193
        %v1195 = vpop.f32.mrf.mxu0
        %v1196 = vadd.f32 0.0, %v1195
        %1197 = vdwg.mxu0
        %s1198 = scalar_lea.vmem %s273, 224 [#allocation11]
        %1199 = vst [vmem:[%s1198] sm:$0xff] %v1188
        %1200 = vst [vmem:[%s1198 + $0x8] sm:$0xff] %v1190
        %1201 = vst [vmem:[%s1198 + $0x10] sm:$0xff] %v1194
        %1202 = vst [vmem:[%s1198 + $0x18] sm:$0xff] %v1196
        %s1203 = sand.u32 %s137, 1
        %s1204 = scalar_lea.sflag [#allocation4], %s1203
        %s1205 = sand.u32 %s137, 1
        %s1206 = smul.addr %s1205, 256
        %s1207 = scalar_lea.vmem [#allocation11], %s1206
        // Predicated region
        $region53: #{tpu_custom_call.1} parent=35 // pred_check
          %p1208 = pneg %p147
        $region54: #{tpu_custom_call.1} parent=35 // pred_check_branch
          %1210 = sbr.rel (%p1208) target = $region56
        $region55: #{tpu_custom_call.1} parent=35 // pred_region
          %s1211 = smul.u32 2, %s29
          %s1213 = ssub.s32 4096, 4096
          %1214 = vsyncadd %s1204, %s1213
          %s1215 = smul.addr %s1211, 2
          %s1216 = smul.addr %s28, 32
          %s1217 = sadd.s32 %s1215, %s1216
          %s1218 = smul.addr %s1217, 128
          %s1219 = scalar_lea.hbm %s4, %s1218
          %s1220 = sshll.u32 %s1207, 4
          %s1221 = int_to_ptr.vmem [resolvable:$true] %s1220
          %1226 = dma.vmem_to_hbm [thread:$0]  %s1221, 4096, %s1219, %s1204, 256, 256, 16
        $region56: #{tpu_custom_call.1} parent=35 // pred_fallthru
          _
      $region36: #{tpu_custom_call.1} parent=5 // pred_fallthru
        _
      %p1227 = scmp.le.s32.totalorder 2, %s19
      // Predicated region
      $region57: #{tpu_custom_call.1} parent=5 // pred_check
        %p1228 = pneg %p1227
      $region58: #{tpu_custom_call.1} parent=5 // pred_check_branch
        %1230 = sbr.rel (%p1228) target = $region60
      $region59: #{tpu_custom_call.1} parent=5 // pred_region
        %s1231 = ssub.s32 %s19, 2
        // Predicated region
        $region61: #{tpu_custom_call.1} parent=59 // pred_check
          %p1232 = pneg %p153
        $region62: #{tpu_custom_call.1} parent=59 // pred_check_branch
          %1234 = sbr.rel (%p1232) target = $region64
        $region63: #{tpu_custom_call.1} parent=59 // pred_region
          %s1235 = sand.u32 %s138, 1
          %s1236 = scalar_lea.sflag [#allocation4], %s1235
          %s1237 = sand.u32 %s138, 1
          %s1238 = smul.addr %s1237, 256
          %s1239 = scalar_lea.vmem [#allocation11], %s1238
          %1240 = dma.done %s1236, 4096
        $region64: #{tpu_custom_call.1} parent=59 // pred_fallthru
          _
      $region60: #{tpu_custom_call.1} parent=5 // pred_fallthru
        _
    $region6: #{tpu_custom_call.1} parent=1 // loop_footer
      %s23 = sadd.s32 1, %s19
    $region7: #{tpu_custom_call.1} parent=1 // loop_footer_branch
      %18 = sbr.rel target = $region3
    $region8: #{tpu_custom_call.1} parent=1 // loop_exit
      _
    %1241 = vsyncpa [#allocation3], 1
    %s1242 = scalar_lea.sflag [#allocation3], 1
    %1243 = vsyncpa %s1242, 1
    %1244 = vsyncpa [#allocation10], 1
    %1245 = vsyncpa [#allocation4], 1
    %s1246 = scalar_lea.sflag [#allocation4], 1
    %1247 = vsyncpa %s1246, 1
    %1248 = vsyncpa [#allocation5], 1
    %s1249 = scalar_lea.sflag [#allocation5], 1
    %1250 = vsyncpa %s1249, 1
    %1251 = vsyncpa [#allocation6], 1
    %s1252 = scalar_lea.sflag [#allocation6], 1
    %1253 = vsyncpa %s1252, 1

</llo_original>
